<compile_context>
chip_gen: v7x
topology: tpu7x:2x2x1
jax: 0.10.0
libtpu: 0.0.40
codegen_flags: <defaults>
</compile_context>

<pallas_src>
import functools

import jax
import jax.numpy as jnp
import numpy as np
from jax.experimental import pallas as pl
from jax.experimental.pallas import tpu as pltpu

_P = 8  # row halo (>= max dilation 4; 8 keeps every scratch *write* sublane-aligned)


def _sfblock_kernel(x_ref, wb_ref, wf_ref, b_ref, o_ref, xpad, tpad, *, H, WC):
    """Fused SFBlock forward for one batch element (all activations VMEM-resident).

    Layout: W and C are folded into one lane-dense axis of width W*C (=128 here); the
    horizontal zero padding + kw taps are folded into the weights, so only the H axis
    carries a data halo.

    x_ref : (1, H, W*C)    f32 input block
    wb_ref: (12, W*C, W*C) bf16 branch weights, 3 kh-matrices per conv
                           in order [b1c1, b1c2, b2c1, b2c2]
    wf_ref: (6, W*C, W*C)  bf16 fuse weights, 3 kh-matrices per Cin-half
                           (first half acts on out1, second on out2)
    b_ref : (5, 1, W*C)    f32 biases [b1c1, b1c2, b2c1, b2c2, b3c1], tiled over W
    o_ref : (1, H, W*C)    output block
    xpad  : (H+2P, W*C)    f32 scratch: row-padded x (shared by both branch heads)
    tpad  : (H+2P, W*C)    f32 scratch: row-padded intermediate activations
    """
    P = _P
    Hp = H + 2 * P

    # Halo-only zeroing: interiors are fully overwritten below; re-zero the halo rows
    # every step so each core's private scratch is valid under "parallel" sharding.
    zrows = jnp.zeros((P, WC), xpad.dtype)
    xpad[0:P, :] = zrows
    xpad[P + H:Hp, :] = zrows
    tpad[0:P, :] = zrows
    tpad[P + H:Hp, :] = zrows

    x = x_ref[0]                                  # (H, WC) f32
    xpad[P:P + H, :] = x                          # sublane-aligned interior write

    def conv_acc(src_ref, w_ref, base, dil, acc=None):
        # 3 row-shifted MXU dots: the 3 kw taps and the W zero padding are already
        # folded into each (WC, WC) weight, so K = WC (128) instead of C (8).
        # Accumulator initialized from the first dot; f32 accumulation.
        for kh in range(3):
            r0 = P + (kh - 1) * dil
            rows = src_ref[r0:r0 + H, :].astype(jnp.bfloat16)       # (H, WC)
            t = jnp.dot(rows, w_ref[base + kh], preferred_element_type=jnp.float32)
            acc = t if acc is None else acc + t
        return acc

    def conv_relu(src_ref, w_ref, base, bias_idx, dil):
        bias = b_ref[bias_idx]                    # (1, WC): one broadcast per conv
        return jnp.maximum(conv_acc(src_ref, w_ref, base, dil) + bias, 0.0)

    # ---- branch 1: conv(dil=1) -> ReLU -> conv(dil=2) -> ReLU -----------------------
    tpad[P:P + H, :] = conv_relu(xpad, wb_ref, 0, 0, 1)
    out1 = conv_relu(tpad, wb_ref, 3, 1, 2)

    # ---- branch 2: conv(dil=3) -> ReLU -> conv(dil=4) -> ReLU (xpad still holds x) --
    tpad[P:P + H, :] = conv_relu(xpad, wb_ref, 6, 2, 3)
    out2 = conv_relu(tpad, wb_ref, 9, 3, 4)

    # ---- fuse conv on cat([out1, out2], channel): two half-weight accumulations -----
    tpad[P:P + H, :] = out1
    acc = conv_acc(tpad, wf_ref, 0, 1)
    tpad[P:P + H, :] = out2
    acc = conv_acc(tpad, wf_ref, 3, 1, acc)
    fused = jnp.maximum(acc + b_ref[4], 0.0)      # ReLU(conv3(cat)), as in torch

    # Residual add; lane-dense 128-wide (unmasked) output store.
    o_ref[0] = (fused + x).astype(o_ref.dtype)


def _fold_conv_weight(w_hwio, dil, width):
    """(3, 3, Cin, Cout) -> (3, width*Cin, width*Cout).

    Per-kh block-diagonal weights with the 3 kw taps and the 'same' zero padding
    along W folded in: E_kw[w', w] = 1 iff w' = w + (kw-1)*dil and both are in range
    (the clipping IS the zero padding), and the kron with the (Cin, Cout) tap places
    that tap on the matching W block.
    """
    mats = []
    for kh in range(3):
        m = None
        for kw in range(3):
            shift = (kw - 1) * dil
            e = jnp.eye(width, width, k=-shift, dtype=w_hwio.dtype)   # (W, W) shift/clip
            blk = jnp.kron(e, w_hwio[kh, kw])                         # (W*Cin, W*Cout)
            m = blk if m is None else m + blk
        mats.append(m)
    return jnp.stack(mats, axis=0)


@jax.jit
def sf_block(params, x_nchw):
    """SFBlock forward. Input/output in NCHW to mirror the PyTorch module."""
    N, C, H, W = x_nchw.shape
    WC = W * C
    # Lane-dense HBM-facing layout: (N, H, W*C); W*C = 128 at the test shape.
    x = jnp.transpose(x_nchw, (0, 2, 3, 1)).reshape(N, H, WC)

    w11, b11 = params["b1c1"]
    w12, b12 = params["b1c2"]
    w21, b21 = params["b2c1"]
    w22, b22 = params["b2c2"]
    w3, b3 = params["b3c1"]

    # Pre-cast folded weights to bf16 in the wrapper: zero weight casts in-kernel.
    wb = jnp.concatenate(
        [_fold_conv_weight(w11, 1, W), _fold_conv_weight(w12, 2, W),
         _fold_conv_weight(w21, 3, W), _fold_conv_weight(w22, 4, W)],
        axis=0).astype(jnp.bfloat16)                                  # (12, WC, WC)
    wf = jnp.concatenate(
        [_fold_conv_weight(w3[:, :, :C, :], 1, W),                    # acts on out1 chans
         _fold_conv_weight(w3[:, :, C:, :], 1, W)],                   # acts on out2 chans
        axis=0).astype(jnp.bfloat16)                                  # (6, WC, WC)
    bb = jnp.stack([jnp.tile(b, W) for b in (b11, b12, b21, b22, b3)],
                   axis=0).reshape(5, 1, WC)                          # f32, layout w*C+c

    kernel = functools.partial(_sfblock_kernel, H=H, WC=WC)
    Hp = H + 2 * _P

    out = pl.pallas_call(
        kernel,
        out_shape=jax.ShapeDtypeStruct((N, H, WC), x_nchw.dtype),
        grid=(N,),
        in_specs=[
            pl.BlockSpec((1, H, WC), lambda n: (n, 0, 0)),
            pl.BlockSpec((12, WC, WC), lambda n: (0, 0, 0)),   # constant index -> weights
            pl.BlockSpec((6, WC, WC), lambda n: (0, 0, 0)),    # fetched once, VMEM-resident
            pl.BlockSpec((5, 1, WC), lambda n: (0, 0, 0)),
        ],
        out_specs=pl.BlockSpec((1, H, WC), lambda n: (n, 0, 0)),
        scratch_shapes=[
            pltpu.VMEM((Hp, WC), jnp.float32),   # row-padded x
            pltpu.VMEM((Hp, WC), jnp.float32),   # row-padded intermediate activations
        ],
        compiler_params=pltpu.CompilerParams(
            dimension_semantics=("parallel",),   # batch axis split across TCs (v7x)
        ),
    )(x, wb, wf, bb)

    return jnp.transpose(out.reshape(N, H, W, C), (0, 3, 1, 2))       # -> NCHW


def init_sfblock_params(n_feats, key):
    """Deterministic init matching nn.Conv2d default (uniform +/- 1/sqrt(fan_in))."""
    def conv_init(k, cin, cout):
        kw_key, kb_key = jax.random.split(k)
        fan_in = cin * 3 * 3
        bound = 1.0 / jnp.sqrt(jnp.float32(fan_in))
        w = jax.random.uniform(kw_key, (3, 3, cin, cout), jnp.float32, -bound, bound)
        b = jax.random.uniform(kb_key, (cout,), jnp.float32, -bound, bound)
        return w, b

    keys = jax.random.split(key, 5)
    return {
        "b1c1": conv_init(keys[0], n_feats, n_feats),        # dil 1, pad 1
        "b1c2": conv_init(keys[1], n_feats, n_feats),        # dil 2, pad 2
        "b2c1": conv_init(keys[2], n_feats, n_feats),        # dil 3, pad 3
        "b2c2": conv_init(keys[3], n_feats, n_feats),        # dil 4, pad 4
        "b3c1": conv_init(keys[4], 2 * n_feats, n_feats),    # dil 1, pad 1
    }


def sf_block_reference(params, x_nchw):
    """Pure-JAX (XLA conv) reference of the PyTorch SFBlock forward."""
    def conv(x, w, b, d):
        y = jax.lax.conv_general_dilated(
            x, w, window_strides=(1, 1), padding=[(d, d), (d, d)],
            rhs_dilation=(d, d), dimension_numbers=("NCHW", "HWIO", "NCHW"))
        return jax.nn.relu(y + b.reshape(1, -1, 1, 1))

    w, b = params["b1c1"]; o1 = conv(x_nchw, w, b, 1)
    w, b = params["b1c2"]; o1 = conv(o1, w, b, 2)
    w, b = params["b2c1"]; o2 = conv(x_nchw, w, b, 3)
    w, b = params["b2c2"]; o2 = conv(o2, w, b, 4)
    c = jnp.concatenate([o1, o2], axis=1)
    w, b = params["b3c1"]; o3 = conv(c, w, b, 1)
    return o3 + x_nchw


if __name__ == "__main__":
    key = jax.random.PRNGKey(0)
    k_param, k_x = jax.random.split(key)

    n_feats = 8
    N, H, W = 2, 16, 16
    x = jax.random.normal(k_x, (N, n_feats, H, W), jnp.float32)   # NCHW like PyTorch

    params = init_sfblock_params(n_feats, k_param)

    out = sf_block(params, x)
    jax.block_until_ready(out)
    assert out.shape == (N, n_feats, H, W), out.shape

    # Numerical check against the XLA reference.  Tolerance bounded by bf16 MXU
    # operand rounding (TPU's default f32 matmul precision is no tighter).
    ref = sf_block_reference(params, x)
    np.testing.assert_allclose(np.asarray(out), np.asarray(ref), atol=5e-2, rtol=5e-2)

    print("KERNEL_OK")
</pallas_src>

<mosaic_0001>
module attributes {stable_mosaic.version = 11 : i64} {
  func.func @_sfblock_kernel(%arg0: i32, %arg1: memref<1x16x128xf32, #tpu.memory_space<vmem>>, %arg2: memref<12x128x128xbf16, #tpu.memory_space<vmem>>, %arg3: memref<6x128x128xbf16, #tpu.memory_space<vmem>>, %arg4: memref<5x1x128xf32, #tpu.memory_space<vmem>>, %arg5: memref<1x16x128xf32, #tpu.memory_space<vmem>>, %arg6: memref<32x128xf32, #tpu.memory_space<vmem>>, %arg7: memref<32x128xf32, #tpu.memory_space<vmem>>) attributes {dimension_semantics = [#tpu.dimension_semantics<parallel>], iteration_bounds = array<i64: 2>, scalar_prefetch = 0 : i64, scratch_operands = 2 : i64, tpu.core_type = #tpu.core_type<tc>, window_params = [{transform_indices = @transform_0, window_bounds = array<i64: 1, 16, 128>}, {pipeline_mode = #tpu.pipeline_mode<synchronous>, transform_indices = @transform_1, window_bounds = array<i64: 12, 128, 128>}, {pipeline_mode = #tpu.pipeline_mode<synchronous>, transform_indices = @transform_2, window_bounds = array<i64: 6, 128, 128>}, {pipeline_mode = #tpu.pipeline_mode<synchronous>, transform_indices = @transform_3, window_bounds = array<i64: 5, 1, 128>}, {transform_indices = @transform_4, window_bounds = array<i64: 1, 16, 128>}]} {
    %cst = arith.constant 0.000000e+00 : f32
    %0 = vector.broadcast %cst : f32 to vector<8x128xf32>
    %c0 = arith.constant 0 : index
    %c0_0 = arith.constant 0 : index
    %1 = vector.load %arg6[%c0, %c0_0] : memref<32x128xf32, #tpu.memory_space<vmem>>, vector<8x128xf32>
    tpu.vector_store %arg6[%c0, %c0_0], %0 {strides = array<i32>} : memref<32x128xf32, #tpu.memory_space<vmem>>, vector<8x128xf32>,
    %c24 = arith.constant 24 : index
    %c0_1 = arith.constant 0 : index
    %2 = vector.load %arg6[%c24, %c0_1] : memref<32x128xf32, #tpu.memory_space<vmem>>, vector<8x128xf32>
    tpu.vector_store %arg6[%c24, %c0_1], %0 {strides = array<i32>} : memref<32x128xf32, #tpu.memory_space<vmem>>, vector<8x128xf32>,
    %c0_2 = arith.constant 0 : index
    %c0_3 = arith.constant 0 : index
    %3 = vector.load %arg7[%c0_2, %c0_3] : memref<32x128xf32, #tpu.memory_space<vmem>>, vector<8x128xf32>
    tpu.vector_store %arg7[%c0_2, %c0_3], %0 {strides = array<i32>} : memref<32x128xf32, #tpu.memory_space<vmem>>, vector<8x128xf32>,
    %c24_4 = arith.constant 24 : index
    %c0_5 = arith.constant 0 : index
    %4 = vector.load %arg7[%c24_4, %c0_5] : memref<32x128xf32, #tpu.memory_space<vmem>>, vector<8x128xf32>
    tpu.vector_store %arg7[%c24_4, %c0_5], %0 {strides = array<i32>} : memref<32x128xf32, #tpu.memory_space<vmem>>, vector<8x128xf32>,
    %c0_6 = arith.constant 0 : index
    %c0_7 = arith.constant 0 : index
    %c0_8 = arith.constant 0 : index
    %5 = vector.load %arg1[%c0_6, %c0_7, %c0_8] : memref<1x16x128xf32, #tpu.memory_space<vmem>>, vector<1x16x128xf32>
    %6 = vector.shape_cast %5 : vector<1x16x128xf32> to vector<16x128xf32>
    %c8 = arith.constant 8 : index
    %c0_9 = arith.constant 0 : index
    %7 = vector.load %arg6[%c8, %c0_9] : memref<32x128xf32, #tpu.memory_space<vmem>>, vector<16x128xf32>
    tpu.vector_store %arg6[%c8, %c0_9], %6 {strides = array<i32>} : memref<32x128xf32, #tpu.memory_space<vmem>>, vector<16x128xf32>,
    %c0_10 = arith.constant 0 : index
    %c0_11 = arith.constant 0 : index
    %c0_12 = arith.constant 0 : index
    %8 = vector.load %arg4[%c0_10, %c0_11, %c0_12] : memref<5x1x128xf32, #tpu.memory_space<vmem>>, vector<1x1x128xf32>
    %9 = vector.shape_cast %8 : vector<1x1x128xf32> to vector<1x128xf32>
    %c7 = arith.constant 7 : index
    %c0_13 = arith.constant 0 : index
    %10 = vector.load %arg6[%c7, %c0_13] : memref<32x128xf32, #tpu.memory_space<vmem>>, vector<16x128xf32>
    %11 = arith.truncf %10 : vector<16x128xf32> to vector<16x128xbf16>
    %c0_14 = arith.constant 0 : index
    %c0_15 = arith.constant 0 : index
    %c0_16 = arith.constant 0 : index
    %12 = vector.load %arg2[%c0_14, %c0_15, %c0_16] : memref<12x128x128xbf16, #tpu.memory_space<vmem>>, vector<1x128x128xbf16>
    %13 = vector.shape_cast %12 : vector<1x128x128xbf16> to vector<128x128xbf16>
    %cst_17 = arith.constant dense<0.000000e+00> : vector<16x128xf32>
    %14 = tpu.matmul %11, %13, %cst_17 {dimension_numbers = #tpu.dot_dimension_numbers<[1], [0], [0], [1], [0, 0, 1, 1], [], []>} : vector<16x128xbf16>, vector<128x128xbf16>, vector<16x128xf32> -> vector<16x128xf32>
    %c8_18 = arith.constant 8 : index
    %c0_19 = arith.constant 0 : index
    %15 = vector.load %arg6[%c8_18, %c0_19] : memref<32x128xf32, #tpu.memory_space<vmem>>, vector<16x128xf32>
    %16 = arith.truncf %15 : vector<16x128xf32> to vector<16x128xbf16>
    %c1 = arith.constant 1 : index
    %c0_20 = arith.constant 0 : index
    %c0_21 = arith.constant 0 : index
    %17 = vector.load %arg2[%c1, %c0_20, %c0_21] : memref<12x128x128xbf16, #tpu.memory_space<vmem>>, vector<1x128x128xbf16>
    %18 = vector.shape_cast %17 : vector<1x128x128xbf16> to vector<128x128xbf16>
    %cst_22 = arith.constant dense<0.000000e+00> : vector<16x128xf32>
    %19 = tpu.matmul %16, %18, %cst_22 {dimension_numbers = #tpu.dot_dimension_numbers<[1], [0], [0], [1], [0, 0, 1, 1], [], []>} : vector<16x128xbf16>, vector<128x128xbf16>, vector<16x128xf32> -> vector<16x128xf32>
    %20 = arith.addf %14, %19 : vector<16x128xf32>
    %c9 = arith.constant 9 : index
    %c0_23 = arith.constant 0 : index
    %21 = vector.load %arg6[%c9, %c0_23] : memref<32x128xf32, #tpu.memory_space<vmem>>, vector<16x128xf32>
    %22 = arith.truncf %21 : vector<16x128xf32> to vector<16x128xbf16>
    %c2 = arith.constant 2 : index
    %c0_24 = arith.constant 0 : index
    %c0_25 = arith.constant 0 : index
    %23 = vector.load %arg2[%c2, %c0_24, %c0_25] : memref<12x128x128xbf16, #tpu.memory_space<vmem>>, vector<1x128x128xbf16>
    %24 = vector.shape_cast %23 : vector<1x128x128xbf16> to vector<128x128xbf16>
    %cst_26 = arith.constant dense<0.000000e+00> : vector<16x128xf32>
    %25 = tpu.matmul %22, %24, %cst_26 {dimension_numbers = #tpu.dot_dimension_numbers<[1], [0], [0], [1], [0, 0, 1, 1], [], []>} : vector<16x128xbf16>, vector<128x128xbf16>, vector<16x128xf32> -> vector<16x128xf32>
    %26 = arith.addf %20, %25 : vector<16x128xf32>
    %27 = vector.broadcast %9 : vector<1x128xf32> to vector<16x128xf32>
    %28 = arith.addf %26, %27 : vector<16x128xf32>
    %cst_27 = arith.constant 0.000000e+00 : f32
    %29 = vector.broadcast %cst_27 : f32 to vector<16x128xf32>
    %30 = arith.maximumf %28, %29 : vector<16x128xf32>
    %c8_28 = arith.constant 8 : index
    %c0_29 = arith.constant 0 : index
    %31 = vector.load %arg7[%c8_28, %c0_29] : memref<32x128xf32, #tpu.memory_space<vmem>>, vector<16x128xf32>
    tpu.vector_store %arg7[%c8_28, %c0_29], %30 {strides = array<i32>} : memref<32x128xf32, #tpu.memory_space<vmem>>, vector<16x128xf32>,
    %c1_30 = arith.constant 1 : index
    %c0_31 = arith.constant 0 : index
    %c0_32 = arith.constant 0 : index
    %32 = vector.load %arg4[%c1_30, %c0_31, %c0_32] : memref<5x1x128xf32, #tpu.memory_space<vmem>>, vector<1x1x128xf32>
    %33 = vector.shape_cast %32 : vector<1x1x128xf32> to vector<1x128xf32>
    %c6 = arith.constant 6 : index
    %c0_33 = arith.constant 0 : index
    %34 = vector.load %arg7[%c6, %c0_33] : memref<32x128xf32, #tpu.memory_space<vmem>>, vector<16x128xf32>
    %35 = arith.truncf %34 : vector<16x128xf32> to vector<16x128xbf16>
    %c3 = arith.constant 3 : index
    %c0_34 = arith.constant 0 : index
    %c0_35 = arith.constant 0 : index
    %36 = vector.load %arg2[%c3, %c0_34, %c0_35] : memref<12x128x128xbf16, #tpu.memory_space<vmem>>, vector<1x128x128xbf16>
    %37 = vector.shape_cast %36 : vector<1x128x128xbf16> to vector<128x128xbf16>
    %cst_36 = arith.constant dense<0.000000e+00> : vector<16x128xf32>
    %38 = tpu.matmul %35, %37, %cst_36 {dimension_numbers = #tpu.dot_dimension_numbers<[1], [0], [0], [1], [0, 0, 1, 1], [], []>} : vector<16x128xbf16>, vector<128x128xbf16>, vector<16x128xf32> -> vector<16x128xf32>
    %c8_37 = arith.constant 8 : index
    %c0_38 = arith.constant 0 : index
    %39 = vector.load %arg7[%c8_37, %c0_38] : memref<32x128xf32, #tpu.memory_space<vmem>>, vector<16x128xf32>
    %40 = arith.truncf %39 : vector<16x128xf32> to vector<16x128xbf16>
    %c4 = arith.constant 4 : index
    %c0_39 = arith.constant 0 : index
    %c0_40 = arith.constant 0 : index
    %41 = vector.load %arg2[%c4, %c0_39, %c0_40] : memref<12x128x128xbf16, #tpu.memory_space<vmem>>, vector<1x128x128xbf16>
    %42 = vector.shape_cast %41 : vector<1x128x128xbf16> to vector<128x128xbf16>
    %cst_41 = arith.constant dense<0.000000e+00> : vector<16x128xf32>
    %43 = tpu.matmul %40, %42, %cst_41 {dimension_numbers = #tpu.dot_dimension_numbers<[1], [0], [0], [1], [0, 0, 1, 1], [], []>} : vector<16x128xbf16>, vector<128x128xbf16>, vector<16x128xf32> -> vector<16x128xf32>
    %44 = arith.addf %38, %43 : vector<16x128xf32>
    %c10 = arith.constant 10 : index
    %c0_42 = arith.constant 0 : index
    %45 = vector.load %arg7[%c10, %c0_42] : memref<32x128xf32, #tpu.memory_space<vmem>>, vector<16x128xf32>
    %46 = arith.truncf %45 : vector<16x128xf32> to vector<16x128xbf16>
    %c5 = arith.constant 5 : index
    %c0_43 = arith.constant 0 : index
    %c0_44 = arith.constant 0 : index
    %47 = vector.load %arg2[%c5, %c0_43, %c0_44] : memref<12x128x128xbf16, #tpu.memory_space<vmem>>, vector<1x128x128xbf16>
    %48 = vector.shape_cast %47 : vector<1x128x128xbf16> to vector<128x128xbf16>
    %cst_45 = arith.constant dense<0.000000e+00> : vector<16x128xf32>
    %49 = tpu.matmul %46, %48, %cst_45 {dimension_numbers = #tpu.dot_dimension_numbers<[1], [0], [0], [1], [0, 0, 1, 1], [], []>} : vector<16x128xbf16>, vector<128x128xbf16>, vector<16x128xf32> -> vector<16x128xf32>
    %50 = arith.addf %44, %49 : vector<16x128xf32>
    %51 = vector.broadcast %33 : vector<1x128xf32> to vector<16x128xf32>
    %52 = arith.addf %50, %51 : vector<16x128xf32>
    %cst_46 = arith.constant 0.000000e+00 : f32
    %53 = vector.broadcast %cst_46 : f32 to vector<16x128xf32>
    %54 = arith.maximumf %52, %53 : vector<16x128xf32>
    %c2_47 = arith.constant 2 : index
    %c0_48 = arith.constant 0 : index
    %c0_49 = arith.constant 0 : index
    %55 = vector.load %arg4[%c2_47, %c0_48, %c0_49] : memref<5x1x128xf32, #tpu.memory_space<vmem>>, vector<1x1x128xf32>
    %56 = vector.shape_cast %55 : vector<1x1x128xf32> to vector<1x128xf32>
    %c5_50 = arith.constant 5 : index
    %c0_51 = arith.constant 0 : index
    %57 = vector.load %arg6[%c5_50, %c0_51] : memref<32x128xf32, #tpu.memory_space<vmem>>, vector<16x128xf32>
    %58 = arith.truncf %57 : vector<16x128xf32> to vector<16x128xbf16>
    %c6_52 = arith.constant 6 : index
    %c0_53 = arith.constant 0 : index
    %c0_54 = arith.constant 0 : index
    %59 = vector.load %arg2[%c6_52, %c0_53, %c0_54] : memref<12x128x128xbf16, #tpu.memory_space<vmem>>, vector<1x128x128xbf16>
    %60 = vector.shape_cast %59 : vector<1x128x128xbf16> to vector<128x128xbf16>
    %cst_55 = arith.constant dense<0.000000e+00> : vector<16x128xf32>
    %61 = tpu.matmul %58, %60, %cst_55 {dimension_numbers = #tpu.dot_dimension_numbers<[1], [0], [0], [1], [0, 0, 1, 1], [], []>} : vector<16x128xbf16>, vector<128x128xbf16>, vector<16x128xf32> -> vector<16x128xf32>
    %c8_56 = arith.constant 8 : index
    %c0_57 = arith.constant 0 : index
    %62 = vector.load %arg6[%c8_56, %c0_57] : memref<32x128xf32, #tpu.memory_space<vmem>>, vector<16x128xf32>
    %63 = arith.truncf %62 : vector<16x128xf32> to vector<16x128xbf16>
    %c7_58 = arith.constant 7 : index
    %c0_59 = arith.constant 0 : index
    %c0_60 = arith.constant 0 : index
    %64 = vector.load %arg2[%c7_58, %c0_59, %c0_60] : memref<12x128x128xbf16, #tpu.memory_space<vmem>>, vector<1x128x128xbf16>
    %65 = vector.shape_cast %64 : vector<1x128x128xbf16> to vector<128x128xbf16>
    %cst_61 = arith.constant dense<0.000000e+00> : vector<16x128xf32>
    %66 = tpu.matmul %63, %65, %cst_61 {dimension_numbers = #tpu.dot_dimension_numbers<[1], [0], [0], [1], [0, 0, 1, 1], [], []>} : vector<16x128xbf16>, vector<128x128xbf16>, vector<16x128xf32> -> vector<16x128xf32>
    %67 = arith.addf %61, %66 : vector<16x128xf32>
    %c11 = arith.constant 11 : index
    %c0_62 = arith.constant 0 : index
    %68 = vector.load %arg6[%c11, %c0_62] : memref<32x128xf32, #tpu.memory_space<vmem>>, vector<16x128xf32>
    %69 = arith.truncf %68 : vector<16x128xf32> to vector<16x128xbf16>
    %c8_63 = arith.constant 8 : index
    %c0_64 = arith.constant 0 : index
    %c0_65 = arith.constant 0 : index
    %70 = vector.load %arg2[%c8_63, %c0_64, %c0_65] : memref<12x128x128xbf16, #tpu.memory_space<vmem>>, vector<1x128x128xbf16>
    %71 = vector.shape_cast %70 : vector<1x128x128xbf16> to vector<128x128xbf16>
    %cst_66 = arith.constant dense<0.000000e+00> : vector<16x128xf32>
    %72 = tpu.matmul %69, %71, %cst_66 {dimension_numbers = #tpu.dot_dimension_numbers<[1], [0], [0], [1], [0, 0, 1, 1], [], []>} : vector<16x128xbf16>, vector<128x128xbf16>, vector<16x128xf32> -> vector<16x128xf32>
    %73 = arith.addf %67, %72 : vector<16x128xf32>
    %74 = vector.broadcast %56 : vector<1x128xf32> to vector<16x128xf32>
    %75 = arith.addf %73, %74 : vector<16x128xf32>
    %cst_67 = arith.constant 0.000000e+00 : f32
    %76 = vector.broadcast %cst_67 : f32 to vector<16x128xf32>
    %77 = arith.maximumf %75, %76 : vector<16x128xf32>
    %c8_68 = arith.constant 8 : index
    %c0_69 = arith.constant 0 : index
    %78 = vector.load %arg7[%c8_68, %c0_69] : memref<32x128xf32, #tpu.memory_space<vmem>>, vector<16x128xf32>
    tpu.vector_store %arg7[%c8_68, %c0_69], %77 {strides = array<i32>} : memref<32x128xf32, #tpu.memory_space<vmem>>, vector<16x128xf32>,
    %c3_70 = arith.constant 3 : index
    %c0_71 = arith.constant 0 : index
    %c0_72 = arith.constant 0 : index
    %79 = vector.load %arg4[%c3_70, %c0_71, %c0_72] : memref<5x1x128xf32, #tpu.memory_space<vmem>>, vector<1x1x128xf32>
    %80 = vector.shape_cast %79 : vector<1x1x128xf32> to vector<1x128xf32>
    %c4_73 = arith.constant 4 : index
    %c0_74 = arith.constant 0 : index
    %81 = vector.load %arg7[%c4_73, %c0_74] : memref<32x128xf32, #tpu.memory_space<vmem>>, vector<16x128xf32>
    %82 = arith.truncf %81 : vector<16x128xf32> to vector<16x128xbf16>
    %c9_75 = arith.constant 9 : index
    %c0_76 = arith.constant 0 : index
    %c0_77 = arith.constant 0 : index
    %83 = vector.load %arg2[%c9_75, %c0_76, %c0_77] : memref<12x128x128xbf16, #tpu.memory_space<vmem>>, vector<1x128x128xbf16>
    %84 = vector.shape_cast %83 : vector<1x128x128xbf16> to vector<128x128xbf16>
    %cst_78 = arith.constant dense<0.000000e+00> : vector<16x128xf32>
    %85 = tpu.matmul %82, %84, %cst_78 {dimension_numbers = #tpu.dot_dimension_numbers<[1], [0], [0], [1], [0, 0, 1, 1], [], []>} : vector<16x128xbf16>, vector<128x128xbf16>, vector<16x128xf32> -> vector<16x128xf32>
    %c8_79 = arith.constant 8 : index
    %c0_80 = arith.constant 0 : index
    %86 = vector.load %arg7[%c8_79, %c0_80] : memref<32x128xf32, #tpu.memory_space<vmem>>, vector<16x128xf32>
    %87 = arith.truncf %86 : vector<16x128xf32> to vector<16x128xbf16>
    %c10_81 = arith.constant 10 : index
    %c0_82 = arith.constant 0 : index
    %c0_83 = arith.constant 0 : index
    %88 = vector.load %arg2[%c10_81, %c0_82, %c0_83] : memref<12x128x128xbf16, #tpu.memory_space<vmem>>, vector<1x128x128xbf16>
    %89 = vector.shape_cast %88 : vector<1x128x128xbf16> to vector<128x128xbf16>
    %cst_84 = arith.constant dense<0.000000e+00> : vector<16x128xf32>
    %90 = tpu.matmul %87, %89, %cst_84 {dimension_numbers = #tpu.dot_dimension_numbers<[1], [0], [0], [1], [0, 0, 1, 1], [], []>} : vector<16x128xbf16>, vector<128x128xbf16>, vector<16x128xf32> -> vector<16x128xf32>
    %91 = arith.addf %85, %90 : vector<16x128xf32>
    %c12 = arith.constant 12 : index
    %c0_85 = arith.constant 0 : index
    %92 = vector.load %arg7[%c12, %c0_85] : memref<32x128xf32, #tpu.memory_space<vmem>>, vector<16x128xf32>
    %93 = arith.truncf %92 : vector<16x128xf32> to vector<16x128xbf16>
    %c11_86 = arith.constant 11 : index
    %c0_87 = arith.constant 0 : index
    %c0_88 = arith.constant 0 : index
    %94 = vector.load %arg2[%c11_86, %c0_87, %c0_88] : memref<12x128x128xbf16, #tpu.memory_space<vmem>>, vector<1x128x128xbf16>
    %95 = vector.shape_cast %94 : vector<1x128x128xbf16> to vector<128x128xbf16>
    %cst_89 = arith.constant dense<0.000000e+00> : vector<16x128xf32>
    %96 = tpu.matmul %93, %95, %cst_89 {dimension_numbers = #tpu.dot_dimension_numbers<[1], [0], [0], [1], [0, 0, 1, 1], [], []>} : vector<16x128xbf16>, vector<128x128xbf16>, vector<16x128xf32> -> vector<16x128xf32>
    %97 = arith.addf %91, %96 : vector<16x128xf32>
    %98 = vector.broadcast %80 : vector<1x128xf32> to vector<16x128xf32>
    %99 = arith.addf %97, %98 : vector<16x128xf32>
    %cst_90 = arith.constant 0.000000e+00 : f32
    %100 = vector.broadcast %cst_90 : f32 to vector<16x128xf32>
    %101 = arith.maximumf %99, %100 : vector<16x128xf32>
    %c8_91 = arith.constant 8 : index
    %c0_92 = arith.constant 0 : index
    %102 = vector.load %arg7[%c8_91, %c0_92] : memref<32x128xf32, #tpu.memory_space<vmem>>, vector<16x128xf32>
    tpu.vector_store %arg7[%c8_91, %c0_92], %54 {strides = array<i32>} : memref<32x128xf32, #tpu.memory_space<vmem>>, vector<16x128xf32>,
    %c7_93 = arith.constant 7 : index
    %c0_94 = arith.constant 0 : index
    %103 = vector.load %arg7[%c7_93, %c0_94] : memref<32x128xf32, #tpu.memory_space<vmem>>, vector<16x128xf32>
    %104 = arith.truncf %103 : vector<16x128xf32> to vector<16x128xbf16>
    %c0_95 = arith.constant 0 : index
    %c0_96 = arith.constant 0 : index
    %c0_97 = arith.constant 0 : index
    %105 = vector.load %arg3[%c0_95, %c0_96, %c0_97] : memref<6x128x128xbf16, #tpu.memory_space<vmem>>, vector<1x128x128xbf16>
    %106 = vector.shape_cast %105 : vector<1x128x128xbf16> to vector<128x128xbf16>
    %cst_98 = arith.constant dense<0.000000e+00> : vector<16x128xf32>
    %107 = tpu.matmul %104, %106, %cst_98 {dimension_numbers = #tpu.dot_dimension_numbers<[1], [0], [0], [1], [0, 0, 1, 1], [], []>} : vector<16x128xbf16>, vector<128x128xbf16>, vector<16x128xf32> -> vector<16x128xf32>
    %c8_99 = arith.constant 8 : index
    %c0_100 = arith.constant 0 : index
    %108 = vector.load %arg7[%c8_99, %c0_100] : memref<32x128xf32, #tpu.memory_space<vmem>>, vector<16x128xf32>
    %109 = arith.truncf %108 : vector<16x128xf32> to vector<16x128xbf16>
    %c1_101 = arith.constant 1 : index
    %c0_102 = arith.constant 0 : index
    %c0_103 = arith.constant 0 : index
    %110 = vector.load %arg3[%c1_101, %c0_102, %c0_103] : memref<6x128x128xbf16, #tpu.memory_space<vmem>>, vector<1x128x128xbf16>
    %111 = vector.shape_cast %110 : vector<1x128x128xbf16> to vector<128x128xbf16>
    %cst_104 = arith.constant dense<0.000000e+00> : vector<16x128xf32>
    %112 = tpu.matmul %109, %111, %cst_104 {dimension_numbers = #tpu.dot_dimension_numbers<[1], [0], [0], [1], [0, 0, 1, 1], [], []>} : vector<16x128xbf16>, vector<128x128xbf16>, vector<16x128xf32> -> vector<16x128xf32>
    %113 = arith.addf %107, %112 : vector<16x128xf32>
    %c9_105 = arith.constant 9 : index
    %c0_106 = arith.constant 0 : index
    %114 = vector.load %arg7[%c9_105, %c0_106] : memref<32x128xf32, #tpu.memory_space<vmem>>, vector<16x128xf32>
    %115 = arith.truncf %114 : vector<16x128xf32> to vector<16x128xbf16>
    %c2_107 = arith.constant 2 : index
    %c0_108 = arith.constant 0 : index
    %c0_109 = arith.constant 0 : index
    %116 = vector.load %arg3[%c2_107, %c0_108, %c0_109] : memref<6x128x128xbf16, #tpu.memory_space<vmem>>, vector<1x128x128xbf16>
    %117 = vector.shape_cast %116 : vector<1x128x128xbf16> to vector<128x128xbf16>
    %cst_110 = arith.constant dense<0.000000e+00> : vector<16x128xf32>
    %118 = tpu.matmul %115, %117, %cst_110 {dimension_numbers = #tpu.dot_dimension_numbers<[1], [0], [0], [1], [0, 0, 1, 1], [], []>} : vector<16x128xbf16>, vector<128x128xbf16>, vector<16x128xf32> -> vector<16x128xf32>
    %119 = arith.addf %113, %118 : vector<16x128xf32>
    %c8_111 = arith.constant 8 : index
    %c0_112 = arith.constant 0 : index
    %120 = vector.load %arg7[%c8_111, %c0_112] : memref<32x128xf32, #tpu.memory_space<vmem>>, vector<16x128xf32>
    tpu.vector_store %arg7[%c8_111, %c0_112], %101 {strides = array<i32>} : memref<32x128xf32, #tpu.memory_space<vmem>>, vector<16x128xf32>,
    %c7_113 = arith.constant 7 : index
    %c0_114 = arith.constant 0 : index
    %121 = vector.load %arg7[%c7_113, %c0_114] : memref<32x128xf32, #tpu.memory_space<vmem>>, vector<16x128xf32>
    %122 = arith.truncf %121 : vector<16x128xf32> to vector<16x128xbf16>
    %c3_115 = arith.constant 3 : index
    %c0_116 = arith.constant 0 : index
    %c0_117 = arith.constant 0 : index
    %123 = vector.load %arg3[%c3_115, %c0_116, %c0_117] : memref<6x128x128xbf16, #tpu.memory_space<vmem>>, vector<1x128x128xbf16>
    %124 = vector.shape_cast %123 : vector<1x128x128xbf16> to vector<128x128xbf16>
    %cst_118 = arith.constant dense<0.000000e+00> : vector<16x128xf32>
    %125 = tpu.matmul %122, %124, %cst_118 {dimension_numbers = #tpu.dot_dimension_numbers<[1], [0], [0], [1], [0, 0, 1, 1], [], []>} : vector<16x128xbf16>, vector<128x128xbf16>, vector<16x128xf32> -> vector<16x128xf32>
    %126 = arith.addf %119, %125 : vector<16x128xf32>
    %c8_119 = arith.constant 8 : index
    %c0_120 = arith.constant 0 : index
    %127 = vector.load %arg7[%c8_119, %c0_120] : memref<32x128xf32, #tpu.memory_space<vmem>>, vector<16x128xf32>
    %128 = arith.truncf %127 : vector<16x128xf32> to vector<16x128xbf16>
    %c4_121 = arith.constant 4 : index
    %c0_122 = arith.constant 0 : index
    %c0_123 = arith.constant 0 : index
    %129 = vector.load %arg3[%c4_121, %c0_122, %c0_123] : memref<6x128x128xbf16, #tpu.memory_space<vmem>>, vector<1x128x128xbf16>
    %130 = vector.shape_cast %129 : vector<1x128x128xbf16> to vector<128x128xbf16>
    %cst_124 = arith.constant dense<0.000000e+00> : vector<16x128xf32>
    %131 = tpu.matmul %128, %130, %cst_124 {dimension_numbers = #tpu.dot_dimension_numbers<[1], [0], [0], [1], [0, 0, 1, 1], [], []>} : vector<16x128xbf16>, vector<128x128xbf16>, vector<16x128xf32> -> vector<16x128xf32>
    %132 = arith.addf %126, %131 : vector<16x128xf32>
    %c9_125 = arith.constant 9 : index
    %c0_126 = arith.constant 0 : index
    %133 = vector.load %arg7[%c9_125, %c0_126] : memref<32x128xf32, #tpu.memory_space<vmem>>, vector<16x128xf32>
    %134 = arith.truncf %133 : vector<16x128xf32> to vector<16x128xbf16>
    %c5_127 = arith.constant 5 : index
    %c0_128 = arith.constant 0 : index
    %c0_129 = arith.constant 0 : index
    %135 = vector.load %arg3[%c5_127, %c0_128, %c0_129] : memref<6x128x128xbf16, #tpu.memory_space<vmem>>, vector<1x128x128xbf16>
    %136 = vector.shape_cast %135 : vector<1x128x128xbf16> to vector<128x128xbf16>
    %cst_130 = arith.constant dense<0.000000e+00> : vector<16x128xf32>
    %137 = tpu.matmul %134, %136, %cst_130 {dimension_numbers = #tpu.dot_dimension_numbers<[1], [0], [0], [1], [0, 0, 1, 1], [], []>} : vector<16x128xbf16>, vector<128x128xbf16>, vector<16x128xf32> -> vector<16x128xf32>
    %138 = arith.addf %132, %137 : vector<16x128xf32>
    %c4_131 = arith.constant 4 : index
    %c0_132 = arith.constant 0 : index
    %c0_133 = arith.constant 0 : index
    %139 = vector.load %arg4[%c4_131, %c0_132, %c0_133] : memref<5x1x128xf32, #tpu.memory_space<vmem>>, vector<1x1x128xf32>
    %140 = vector.shape_cast %139 : vector<1x1x128xf32> to vector<1x128xf32>
    %141 = vector.broadcast %140 : vector<1x128xf32> to vector<16x128xf32>
    %142 = arith.addf %138, %141 : vector<16x128xf32>
    %cst_134 = arith.constant 0.000000e+00 : f32
    %143 = vector.broadcast %cst_134 : f32 to vector<16x128xf32>
    %144 = arith.maximumf %142, %143 : vector<16x128xf32>
    %145 = arith.addf %144, %6 : vector<16x128xf32>
    %c0_135 = arith.constant 0 : index
    %c0_136 = arith.constant 0 : index
    %c0_137 = arith.constant 0 : index
    %146 = vector.load %arg5[%c0_135, %c0_136, %c0_137] : memref<1x16x128xf32, #tpu.memory_space<vmem>>, vector<1x16x128xf32>
    %147 = vector.shape_cast %146 : vector<1x16x128xf32> to vector<16x128xf32>
    %148 = vector.shape_cast %145 : vector<16x128xf32> to vector<1x16x128xf32>
    tpu.vector_store %arg5[%c0_135, %c0_136, %c0_137], %148 {strides = array<i32>} : memref<1x16x128xf32, #tpu.memory_space<vmem>>, vector<1x16x128xf32>,
    return
  }
  func.func @transform_0(%arg0: i32) -> (i32, i32, i32) {
    %c0_i32 = arith.constant 0 : i32
    %c0_i32_0 = arith.constant 0 : i32
    %c0_i32_1 = arith.constant 0 : i32
    return %arg0, %c0_i32, %c0_i32_0 : i32, i32, i32
  }
  func.func @transform_1(%arg0: i32) -> (i32, i32, i32) {
    %c0_i32 = arith.constant 0 : i32
    %c0_i32_0 = arith.constant 0 : i32
    %c0_i32_1 = arith.constant 0 : i32
    %c0_i32_2 = arith.constant 0 : i32
    return %c0_i32, %c0_i32_0, %c0_i32_1 : i32, i32, i32
  }
  func.func @transform_2(%arg0: i32) -> (i32, i32, i32) {
    %c0_i32 = arith.constant 0 : i32
    %c0_i32_0 = arith.constant 0 : i32
    %c0_i32_1 = arith.constant 0 : i32
    %c0_i32_2 = arith.constant 0 : i32
    return %c0_i32, %c0_i32_0, %c0_i32_1 : i32, i32, i32
  }
  func.func @transform_3(%arg0: i32) -> (i32, i32, i32) {
    %c0_i32 = arith.constant 0 : i32
    %c0_i32_0 = arith.constant 0 : i32
    %c0_i32_1 = arith.constant 0 : i32
    %c0_i32_2 = arith.constant 0 : i32
    return %c0_i32, %c0_i32_0, %c0_i32_1 : i32, i32, i32
  }
  func.func @transform_4(%arg0: i32) -> (i32, i32, i32) {
    %c0_i32 = arith.constant 0 : i32
    %c0_i32_0 = arith.constant 0 : i32
    %c0_i32_1 = arith.constant 0 : i32
    return %arg0, %c0_i32, %c0_i32_0 : i32, i32, i32
  }
}

</mosaic_0001>

<llo_original>
// kernel: tile.28
$region0: #{tile.28}
  #allocation0 [shape = 's32[1]{0}', space=sflag, size = 0x4, scoped, tag = 'scoped memory for tile.28']
  %s0 = inlined_call_operand.vmem [shape: f32[8], index: 0, kind: input, shape index: {}]
  %s1 = inlined_call_operand.vmem [shape: f32[16,8], index: 1, kind: output, shape index: {}]
  // Predicated region
  $region2: #{tile.28} parent=0 // pred_check
    _
  $region3: #{tile.28} parent=0 // pred_check_branch
    %3 = sbr.rel (0) target = $region5
  $region4: #{tile.28} parent=0 // pred_region
    _
  $region5: #{tile.28} parent=0 // pred_fallthru
    _
  %v4 = vld [vmem:[%s0] ss:$0 sm:$0xff]
  %5 = vst [vmem:[%s1] sm:$0xff] %v4
  %s6 = scalar_lea.vmem %s1, 8
  %7 = vst [vmem:[%s6] sm:$0xff] %v4

// kernel: tile.45
$region0: #{tile.45}
  %s0 = inlined_call_operand.vmem [shape: f32[16,8], index: 0, kind: input, shape index: {}]
  %s1 = inlined_call_operand.vmem [shape: f32[1,128], index: 1, kind: output, shape index: {}]
  $region1: #{tile.45} parent=0
    #allocation0 [shape = 'u8[4096]{0}', space=vmem, size = 0x1000, scoped, tag = 'scoped mem for output reshape']
    %v2 = vld [vmem:[%s0] sm:$0x1]
    %vm3 = vcmask 64512
    %4 = vst.msk [vmem:[#allocation0] sm:$0x1] %vm3, %v2
    %s5 = scalar_lea.vmem %s0, 15
    %v6 = vld [vmem:[%s5] sm:$0x1]
    %7 = vrot.lane.b32.xlu0 %v6, 120
    %v8 = vpop.permute.xlu0 %7
    %vm9 = vcmask 1048512
    %10 = vst.msk [vmem:[#allocation0] sm:$0x1] %vm9, %v8
    %s11 = scalar_lea.vmem %s0, 14
    %v12 = vld [vmem:[%s11] sm:$0x1]
    %13 = vrot.lane.b32.xlu0 %v12, 112
    %v14 = vpop.permute.xlu0 %13
    %vm15 = vcmask 982912
    %16 = vst.msk [vmem:[#allocation0] sm:$0x1] %vm15, %v14
    %s17 = scalar_lea.vmem %s0, 13
    %v18 = vld [vmem:[%s17] sm:$0x1]
    %19 = vrot.lane.b32.xlu0 %v18, 104
    %v20 = vpop.permute.xlu0 %19
    %vm21 = vcmask 917312
    %22 = vst.msk [vmem:[#allocation0] sm:$0x1] %vm21, %v20
    %s23 = scalar_lea.vmem %s0, 12
    %v24 = vld [vmem:[%s23] sm:$0x1]
    %25 = vrot.lane.b32.xlu0 %v24, 96
    %v26 = vpop.permute.xlu0 %25
    %vm27 = vcmask 851712
    %28 = vst.msk [vmem:[#allocation0] sm:$0x1] %vm27, %v26
    %s29 = scalar_lea.vmem %s0, 11
    %v30 = vld [vmem:[%s29] sm:$0x1]
    %31 = vrot.lane.b32.xlu0 %v30, 88
    %v32 = vpop.permute.xlu0 %31
    %vm33 = vcmask 786112
    %34 = vst.msk [vmem:[#allocation0] sm:$0x1] %vm33, %v32
    %s35 = scalar_lea.vmem %s0, 10
    %v36 = vld [vmem:[%s35] sm:$0x1]
    %37 = vrot.lane.b32.xlu0 %v36, 80
    %v38 = vpop.permute.xlu0 %37
    %vm39 = vcmask 720512
    %40 = vst.msk [vmem:[#allocation0] sm:$0x1] %vm39, %v38
    %s41 = scalar_lea.vmem %s0, 9
    %v42 = vld [vmem:[%s41] sm:$0x1]
    %43 = vrot.lane.b32.xlu0 %v42, 72
    %v44 = vpop.permute.xlu0 %43
    %vm45 = vcmask 654912
    %46 = vst.msk [vmem:[#allocation0] sm:$0x1] %vm45, %v44
    %s47 = scalar_lea.vmem %s0, 8
    %v48 = vld [vmem:[%s47] sm:$0x1]
    %49 = vrot.lane.b32.xlu0 %v48, 64
    %v50 = vpop.permute.xlu0 %49
    %vm51 = vcmask 589312
    %52 = vst.msk [vmem:[#allocation0] sm:$0x1] %vm51, %v50
    %s53 = scalar_lea.vmem %s0, 7
    %v54 = vld [vmem:[%s53] sm:$0x1]
    %55 = vrot.lane.b32.xlu0 %v54, 56
    %v56 = vpop.permute.xlu0 %55
    %vm57 = vcmask 523712
    %58 = vst.msk [vmem:[#allocation0] sm:$0x1] %vm57, %v56
    %s59 = scalar_lea.vmem %s0, 6
    %v60 = vld [vmem:[%s59] sm:$0x1]
    %61 = vrot.lane.b32.xlu0 %v60, 48
    %v62 = vpop.permute.xlu0 %61
    %vm63 = vcmask 458112
    %64 = vst.msk [vmem:[#allocation0] sm:$0x1] %vm63, %v62
    %s65 = scalar_lea.vmem %s0, 5
    %v66 = vld [vmem:[%s65] sm:$0x1]
    %67 = vrot.lane.b32.xlu0 %v66, 40
    %v68 = vpop.permute.xlu0 %67
    %vm69 = vcmask 392512
    %70 = vst.msk [vmem:[#allocation0] sm:$0x1] %vm69, %v68
    %s71 = scalar_lea.vmem %s0, 4
    %v72 = vld [vmem:[%s71] sm:$0x1]
    %73 = vrot.lane.b32.xlu0 %v72, 32
    %v74 = vpop.permute.xlu0 %73
    %vm75 = vcmask 326912
    %76 = vst.msk [vmem:[#allocation0] sm:$0x1] %vm75, %v74
    %s77 = scalar_lea.vmem %s0, 3
    %v78 = vld [vmem:[%s77] sm:$0x1]
    %79 = vrot.lane.b32.xlu0 %v78, 24
    %v80 = vpop.permute.xlu0 %79
    %vm81 = vcmask 261312
    %82 = vst.msk [vmem:[#allocation0] sm:$0x1] %vm81, %v80
    %s83 = scalar_lea.vmem %s0, 2
    %v84 = vld [vmem:[%s83] sm:$0x1]
    %85 = vrot.lane.b32.xlu0 %v84, 16
    %v86 = vpop.permute.xlu0 %85
    %vm87 = vcmask 195712
    %88 = vst.msk [vmem:[#allocation0] sm:$0x1] %vm87, %v86
    %s89 = scalar_lea.vmem %s0, 1
    %v90 = vld [vmem:[%s89] sm:$0x1]
    %91 = vrot.lane.b32.xlu0 %v90, 8
    %v92 = vpop.permute.xlu0 %91
    %vm93 = vcmask 130112
    %94 = vst.msk [vmem:[#allocation0] sm:$0x1] %vm93, %v92
    %s96 = sshllo.u32 0, 1
    %v98 = vld [vmem:[#allocation0] sm:%s96]
    %s99 = sshllo.u32 0, 1
    %100 = vst [vmem:[%s1] sm:%s99] %v98

// kernel: sf_block.1
$region0: #{sf_block.1}
  #allocation0 [shape = 'u32[]', space=smem, size = 0x4, offset = 0x4, fixed_abs, tag = 'smem constant byte address 0x4 - core index']
  #allocation1 [shape = 'u32[144,128]{1,0:T(1,128)}', space=vmem, size = 0x12000, scoped, tag = 'internal scratch']
  #allocation2 [shape = 'f32[32,128]{1,0:T(8,128)}', space=vmem, size = 0x4000, scoped, tag = 'scratch operand']
  #allocation3 [shape = 'f32[32,128]{1,0:T(8,128)}', space=vmem, size = 0x4000, scoped, tag = 'scratch operand']
  %s0 = inlined_call_operand.vmem [shape: f32[2,16,128], index: 0, kind: input, shape index: {}]
  %s1 = inlined_call_operand.vmem [shape: bf16[12,128,128], index: 1, kind: input, shape index: {}]
  %s2 = inlined_call_operand.vmem [shape: bf16[6,128,128], index: 2, kind: input, shape index: {}]
  %s3 = inlined_call_operand.vmem [shape: f32[5,1,128], index: 3, kind: input, shape index: {}]
  %s4 = inlined_call_operand.vmem [shape: f32[2,16,128], index: 4, kind: output, shape index: {}]
  %s5 = sld [smem:[#allocation0]]
  $region49: #{sf_block.1} parent=0
    _
  %s7 = ssub.s32 1, %s5
  %s8 = scalar_select 0, %s7, %s5
  loop: start=0, step=1, limit=4
  $region2: #{sf_block.1} parent=0 // loop_pre_header
    _
  $region3: #{sf_block.1} parent=0 // loop_header
    %s10 = sphi 0, %s14
    %p11 = scmp.ge.s32.totalorder %s10, 4
    %s20 = sphi 0, %s22
    %s23 = sphi 0, %s20
    %s24 = sphi 0, %s23
    %s40 = sphi 0, %s24
    %s44 = sphi 0, %s44
    %s46 = sphi 0, %s44
    %s47 = sphi 0, %s46
    %s61 = sphi 0, %s47
    %s65 = sphi 0, %s65
    %s67 = sphi 0, %s65
    %s68 = sphi 0, %s67
    %s82 = sphi 0, %s68
    %s86 = sphi 0, %s86
    %s88 = sphi 0, %s86
    %s89 = sphi 0, %s88
    %s103 = sphi 0, %s89
    %s109 = sphi 0, %s111
    %s112 = sphi 0, %s109
    %s113 = sphi 0, %s112
    %s129 = sphi 0, %s113
  $region4: #{sf_block.1} parent=0 // loop_header_branch
    %13 = sbr.rel (%p11) target = $region8
  $region5: #{sf_block.1} parent=0 // loop_body
    %s15 = ssub.s32 %s10, 1
    %s16 = ssub.s32 %s10, 2
    %s17 = sadd.s32 %s10, 1
    %s18 = ssub.s32 %s10, %s17
    %p19 = scmp.eq.s32.totalorder %s18, 0
    %s21 = sadd.s32 %s20, 1
    %s22 = scalar_select %p19, %s20, %s21
    %p25 = pneg %p19
    %p26 = scmp.eq.s32.totalorder %s10, 1
    %p27 = por %p25, %p26
    %p28 = scmp.ne.s32.totalorder %s20, %s23
    %p29 = scmp.eq.s32.totalorder %s10, 0
    %p30 = por %p28, %p29
    %p31 = scmp.ne.s32.totalorder %s20, %s23
    %p32 = scmp.eq.s32.totalorder %s15, 1
    %p33 = por %p31, %p32
    %p34 = scmp.ne.s32.totalorder %s23, %s24
    %p35 = scmp.eq.s32.totalorder %s15, 0
    %p36 = por %p34, %p35
    %p37 = scmp.ne.s32.totalorder %s23, %s24
    %p38 = scmp.eq.s32.totalorder %s16, 1
    %p39 = por %p37, %p38
    %p41 = scmp.ne.s32.totalorder %s24, %s40
    %p42 = scmp.eq.s32.totalorder %s16, 0
    %p43 = por %p41, %p42
    %s45 = sadd.s32 %s44, 1
    %p48 = scmp.eq.s32.totalorder %s10, 1
    %p49 = scmp.ne.s32.totalorder %s44, %s46
    %p50 = scmp.eq.s32.totalorder %s10, 0
    %p51 = por %p49, %p50
    %p52 = scmp.ne.s32.totalorder %s44, %s46
    %p53 = scmp.eq.s32.totalorder %s15, 1
    %p54 = por %p52, %p53
    %p55 = scmp.ne.s32.totalorder %s46, %s47
    %p56 = scmp.eq.s32.totalorder %s15, 0
    %p57 = por %p55, %p56
    %p58 = scmp.ne.s32.totalorder %s46, %s47
    %p59 = scmp.eq.s32.totalorder %s16, 1
    %p60 = por %p58, %p59
    %p62 = scmp.ne.s32.totalorder %s47, %s61
    %p63 = scmp.eq.s32.totalorder %s16, 0
    %p64 = por %p62, %p63
    %s66 = sadd.s32 %s65, 1
    %p69 = scmp.eq.s32.totalorder %s10, 1
    %p70 = scmp.ne.s32.totalorder %s65, %s67
    %p71 = scmp.eq.s32.totalorder %s10, 0
    %p72 = por %p70, %p71
    %p73 = scmp.ne.s32.totalorder %s65, %s67
    %p74 = scmp.eq.s32.totalorder %s15, 1
    %p75 = por %p73, %p74
    %p76 = scmp.ne.s32.totalorder %s67, %s68
    %p77 = scmp.eq.s32.totalorder %s15, 0
    %p78 = por %p76, %p77
    %p79 = scmp.ne.s32.totalorder %s67, %s68
    %p80 = scmp.eq.s32.totalorder %s16, 1
    %p81 = por %p79, %p80
    %p83 = scmp.ne.s32.totalorder %s68, %s82
    %p84 = scmp.eq.s32.totalorder %s16, 0
    %p85 = por %p83, %p84
    %s87 = sadd.s32 %s86, 1
    %p90 = scmp.eq.s32.totalorder %s10, 1
    %p91 = scmp.ne.s32.totalorder %s86, %s88
    %p92 = scmp.eq.s32.totalorder %s10, 0
    %p93 = por %p91, %p92
    %p94 = scmp.ne.s32.totalorder %s86, %s88
    %p95 = scmp.eq.s32.totalorder %s15, 1
    %p96 = por %p94, %p95
    %p97 = scmp.ne.s32.totalorder %s88, %s89
    %p98 = scmp.eq.s32.totalorder %s15, 0
    %p99 = por %p97, %p98
    %p100 = scmp.ne.s32.totalorder %s88, %s89
    %p101 = scmp.eq.s32.totalorder %s16, 1
    %p102 = por %p100, %p101
    %p104 = scmp.ne.s32.totalorder %s89, %s103
    %p105 = scmp.eq.s32.totalorder %s16, 0
    %p106 = por %p104, %p105
    %s107 = ssub.s32 %s10, %s17
    %p108 = scmp.eq.s32.totalorder %s107, 0
    %s110 = sadd.s32 %s109, 1
    %s111 = scalar_select %p108, %s109, %s110
    %p114 = pneg %p108
    %p115 = scmp.eq.s32.totalorder %s10, 1
    %p116 = por %p114, %p115
    %p117 = scmp.ne.s32.totalorder %s109, %s112
    %p118 = scmp.eq.s32.totalorder %s10, 0
    %p119 = por %p117, %p118
    %p120 = scmp.ne.s32.totalorder %s109, %s112
    %p121 = scmp.eq.s32.totalorder %s15, 1
    %p122 = por %p120, %p121
    %p123 = scmp.ne.s32.totalorder %s112, %s113
    %p124 = scmp.eq.s32.totalorder %s15, 0
    %p125 = por %p123, %p124
    %p126 = scmp.ne.s32.totalorder %s112, %s113
    %p127 = scmp.eq.s32.totalorder %s16, 1
    %p128 = por %p126, %p127
    %p130 = scmp.ne.s32.totalorder %s113, %s129
    %p131 = scmp.eq.s32.totalorder %s16, 0
    %p132 = por %p130, %p131
    %p133 = scmp.le.s32.totalorder 1, %s10
    %p134 = scmp.lt.s32.totalorder %s10, 3
    %p135 = pnand %p133, %p134
    %p136 = pneg %p135
    // Predicated region
    $region9: #{sf_block.1} parent=5 // pred_check
      _
    $region10: #{sf_block.1} parent=5 // pred_check_branch
      %138 = sbr.rel (%p135) target = $region12
    $region11: #{sf_block.1} parent=5 // pred_region
      %s139 = ssub.s32 %s10, 1
      // Predicated region
      $region13: #{sf_block.1} parent=11 // pred_check
        %p140 = pneg %p57
      $region14: #{sf_block.1} parent=11 // pred_check_branch
        %142 = sbr.rel (%p140) target = $region16
      $region15: #{sf_block.1} parent=11 // pred_region
        _
      $region16: #{sf_block.1} parent=11 // pred_fallthru
        _
      // Predicated region
      $region17: #{sf_block.1} parent=11 // pred_check
        %p143 = pneg %p78
      $region18: #{sf_block.1} parent=11 // pred_check_branch
        %145 = sbr.rel (%p143) target = $region20
      $region19: #{sf_block.1} parent=11 // pred_region
        _
      $region20: #{sf_block.1} parent=11 // pred_fallthru
        _
      // Predicated region
      $region21: #{sf_block.1} parent=11 // pred_check
        %p146 = pneg %p99
      $region22: #{sf_block.1} parent=11 // pred_check_branch
        %148 = sbr.rel (%p146) target = $region24
      $region23: #{sf_block.1} parent=11 // pred_region
        _
      $region24: #{sf_block.1} parent=11 // pred_fallthru
        _
    $region12: #{sf_block.1} parent=5 // pred_fallthru
      _
    %p149 = scmp.lt.s32.totalorder %s10, 2
    // Predicated region
    $region25: #{sf_block.1} parent=5 // pred_check
      %p150 = pneg %p149
    $region26: #{sf_block.1} parent=5 // pred_check_branch
      %152 = sbr.rel (%p150) target = $region28
    $region27: #{sf_block.1} parent=5 // pred_region
      // Predicated region
      $region29: #{sf_block.1} parent=27 // pred_check
        %p153 = pneg %p30
      $region30: #{sf_block.1} parent=27 // pred_check_branch
        %155 = sbr.rel (%p153) target = $region32
      $region31: #{sf_block.1} parent=27 // pred_region
        %p156 = scmp.lt.s32.totalorder %s10, 1
        %s157 = scalar_select %p156, %s10, 1
        %s158 = smul.addr %s157, 2
        %s159 = smul.addr %s158, 8
        %s160 = scalar_lea.vmem %s0, %s159
      $region32: #{sf_block.1} parent=27 // pred_fallthru
        _
    $region28: #{sf_block.1} parent=5 // pred_fallthru
      _
    %p161 = scmp.le.s32.totalorder 1, %s10
    %p162 = scmp.lt.s32.totalorder %s10, 3
    %p163 = pnand %p161, %p162
    %p164 = pneg %p163
    // Predicated region
    $region33: #{sf_block.1} parent=5 // pred_check
      _
    $region34: #{sf_block.1} parent=5 // pred_check_branch
      %166 = sbr.rel (%p163) target = $region36
    $region35: #{sf_block.1} parent=5 // pred_region
      %s167 = ssub.s32 %s10, 1
      %p168 = scmp.lt.s32.totalorder %s15, 1
      %s169 = scalar_select %p168, %s15, 1
      %s170 = smul.addr %s169, 2
      %s171 = smul.addr %s170, 8
      %s172 = scalar_lea.vmem %s0, %s171
      %p173 = pneg %p36
      %p174 = pneg %p33
      %p175 = pneg %p57
      %p176 = pneg %p54
      %p177 = pneg %p78
      %p178 = pneg %p75
      %p179 = pneg %p99
      %p180 = pneg %p96
      %p181 = pneg %p125
      %p182 = pneg %p122
      %p183 = scmp.lt.s32.totalorder %s15, 1
      %s184 = scalar_select %p183, %s15, 1
      %s185 = smul.addr %s184, 2
      %s186 = smul.addr %s185, 8
      %s187 = scalar_lea.vmem %s4, %s186
      %p188 = scmp.lt.s32.totalorder %s15, 1
      %s189 = scalar_select %p188, %s15, 1
      %s190 = smul.addr %s189, 2
      %s191 = smul.addr %s190, 8
      %s192 = scalar_lea.vmem %s0, %s191
      %p193 = scmp.lt.s32.totalorder %s15, 1
      %s194 = scalar_select %p193, %s15, 1
      %s195 = smul.addr %s194, 2
      %s196 = smul.addr %s195, 8
      %s197 = scalar_lea.vmem %s4, %s196
      %199 = vst [vmem:[#allocation2] sm:$0xff] 0.0
      %200 = vst [vmem:[#allocation2 + $0x18] sm:$0xff] 0.0
      %201 = vst [vmem:[#allocation3] sm:$0xff] 0.0
      %202 = vst [vmem:[#allocation3 + $0x18] sm:$0xff] 0.0
      %v203 = vld [vmem:[%s192] sm:$0xff]
      %v204 = vld [vmem:[%s192 + $0x8] sm:$0xff]
      %205 = vst [vmem:[#allocation2 + $0x8] sm:$0xff] %v203
      %206 = vst [vmem:[#allocation2 + $0x10] sm:$0xff] %v204
      %v207 = vld [vmem:[%s3] sm:$0x1]
      %v208 = vld [vmem:[#allocation2 + $0x7] sm:$0xff]
      %v209 = vld [vmem:[#allocation2 + $0xf] sm:$0xff]
      %v210 = vpack.c.bf16 %v209, %v208
      %v211 = vld [vmem:[%s1] sm:$0xf]
      %v212 = vld [vmem:[%s1 + $0x4] sm:$0xf]
      %v213 = vld [vmem:[%s1 + $0x8] sm:$0xf]
      %v214 = vld [vmem:[%s1 + $0xc] sm:$0xf]
      %v215 = vld [vmem:[%s1 + $0x10] sm:$0xf]
      %v216 = vld [vmem:[%s1 + $0x14] sm:$0xf]
      %v217 = vld [vmem:[%s1 + $0x18] sm:$0xf]
      %v218 = vld [vmem:[%s1 + $0x1c] sm:$0xf]
      %v219 = vld [vmem:[%s1 + $0x20] sm:$0xf]
      %v220 = vld [vmem:[%s1 + $0x24] sm:$0xf]
      %v221 = vld [vmem:[%s1 + $0x28] sm:$0xf]
      %v222 = vld [vmem:[%s1 + $0x2c] sm:$0xf]
      %v223 = vld [vmem:[%s1 + $0x30] sm:$0xf]
      %v224 = vld [vmem:[%s1 + $0x34] sm:$0xf]
      %v225 = vld [vmem:[%s1 + $0x38] sm:$0xf]
      %v226 = vld [vmem:[%s1 + $0x3c] sm:$0xf]
      %v227 = vld [vmem:[#allocation2 + $0x8] sm:$0xff]
      %v228 = vld [vmem:[#allocation2 + $0x10] sm:$0xff]
      %v229 = vpack.c.bf16 %v228, %v227
      %s230 = scalar_lea.vmem %s1, 64
      %v231 = vld [vmem:[%s230] sm:$0xf]
      %v232 = vld [vmem:[%s230 + $0x4] sm:$0xf]
      %v233 = vld [vmem:[%s230 + $0x8] sm:$0xf]
      %v234 = vld [vmem:[%s230 + $0xc] sm:$0xf]
      %v235 = vld [vmem:[%s230 + $0x10] sm:$0xf]
      %v236 = vld [vmem:[%s230 + $0x14] sm:$0xf]
      %v237 = vld [vmem:[%s230 + $0x18] sm:$0xf]
      %v238 = vld [vmem:[%s230 + $0x1c] sm:$0xf]
      %v239 = vld [vmem:[%s230 + $0x20] sm:$0xf]
      %v240 = vld [vmem:[%s230 + $0x24] sm:$0xf]
      %v241 = vld [vmem:[%s230 + $0x28] sm:$0xf]
      %v242 = vld [vmem:[%s230 + $0x2c] sm:$0xf]
      %v243 = vld [vmem:[%s230 + $0x30] sm:$0xf]
      %v244 = vld [vmem:[%s230 + $0x34] sm:$0xf]
      %v245 = vld [vmem:[%s230 + $0x38] sm:$0xf]
      %v246 = vld [vmem:[%s230 + $0x3c] sm:$0xf]
      %v263 = vunpack.c.l.b16 %v231
      %v264 = vunpack.c.l.b16 %v232
      %v265 = vunpack.c.l.b16 %v233
      %v266 = vunpack.c.l.b16 %v234
      %v267 = vunpack.c.l.b16 %v235
      %v268 = vunpack.c.l.b16 %v236
      %v269 = vunpack.c.l.b16 %v237
      %v270 = vunpack.c.l.b16 %v238
      %v271 = vunpack.c.l.b16 %v239
      %v272 = vunpack.c.l.b16 %v240
      %v273 = vunpack.c.l.b16 %v241
      %v274 = vunpack.c.l.b16 %v242
      %v275 = vunpack.c.l.b16 %v243
      %v276 = vunpack.c.l.b16 %v244
      %v277 = vunpack.c.l.b16 %v245
      %v278 = vunpack.c.l.b16 %v246
      %v279 = vpack.c.b16 %v264, %v263
      %v280 = vpack.c.b16 %v266, %v265
      %v281 = vpack.c.b16 %v268, %v267
      %v282 = vpack.c.b16 %v270, %v269
      %v283 = vpack.c.b16 %v272, %v271
      %v284 = vpack.c.b16 %v274, %v273
      %v285 = vpack.c.b16 %v276, %v275
      %v286 = vpack.c.b16 %v278, %v277
      %295 = vmatprep.subr.bf16.mxu0 0
      %296 = vmatpush1.bf16.msra.mxu0 %v279
      %297 = vmatprep.subr.bf16.mxu0 0
      %298 = vmatpush1.bf16.msra.mxu0 %v280
      %299 = vmatprep.subr.bf16.mxu0 0
      %300 = vmatpush1.bf16.msra.mxu0 %v281
      %301 = vmatprep.subr.bf16.mxu0 0
      %302 = vmatpush1.bf16.msra.mxu0 %v282
      %303 = vmatprep.subr.bf16.mxu0 0
      %304 = vmatpush1.bf16.msra.mxu0 %v283
      %305 = vmatprep.subr.bf16.mxu0 0
      %306 = vmatpush1.bf16.msra.mxu0 %v284
      %307 = vmatprep.subr.bf16.mxu0 0
      %308 = vmatpush1.bf16.msra.mxu0 %v285
      %309 = vmatprep.subr.bf16.mxu0 0
      %310 = vmatpush1.bf16.msra.mxu0 %v286
      %311 = vmatprep.subr.bf16.mxu0 0
      %312 = vmatpush1.bf16.msra.mxu0 0
      %313 = vmatprep.subr.bf16.mxu0 0
      %314 = vmatpush1.bf16.msra.mxu0 0
      %315 = vmatprep.subr.bf16.mxu0 0
      %316 = vmatpush1.bf16.msra.mxu0 0
      %317 = vmatprep.subr.bf16.mxu0 0
      %318 = vmatpush1.bf16.msra.mxu0 0
      %319 = vmatprep.subr.bf16.mxu0 0
      %320 = vmatpush1.bf16.msra.mxu0 0
      %321 = vmatprep.subr.bf16.mxu0 0
      %322 = vmatpush1.bf16.msra.mxu0 0
      %323 = vmatprep.subr.bf16.mxu0 0
      %324 = vmatpush1.bf16.msra.mxu0 0
      %325 = vmatprep.subr.bf16.mxu0 0
      %326 = vmatpush1.bf16.msra.mxu0 0
      %327 = vmatprep.mubr.bf16.mxu0 0
      %328 = vmatmul.mubr.bf16.gmra.mrb[0].mxu0 %v229
      %v329 = vpop.f32.mrb[0].mxu0
      %v330 = vadd.f32 0.0, %v329
      %v331 = vpop.f32.mrb[0].mxu0
      %v332 = vpop.f32.mrb[0].mxu0
      %v333 = vadd.f32 0.0, %v332
      %v334 = vpop.f32.mrb[0].mxu0
      %335 = vdwg.mxu0
      %v352 = vunpack.c.l.b16 %v211
      %v353 = vunpack.c.l.b16 %v212
      %v354 = vunpack.c.l.b16 %v213
      %v355 = vunpack.c.l.b16 %v214
      %v356 = vunpack.c.l.b16 %v215
      %v357 = vunpack.c.l.b16 %v216
      %v358 = vunpack.c.l.b16 %v217
      %v359 = vunpack.c.l.b16 %v218
      %v360 = vunpack.c.l.b16 %v219
      %v361 = vunpack.c.l.b16 %v220
      %v362 = vunpack.c.l.b16 %v221
      %v363 = vunpack.c.l.b16 %v222
      %v364 = vunpack.c.l.b16 %v223
      %v365 = vunpack.c.l.b16 %v224
      %v366 = vunpack.c.l.b16 %v225
      %v367 = vunpack.c.l.b16 %v226
      %v368 = vpack.c.b16 %v353, %v352
      %v369 = vpack.c.b16 %v355, %v354
      %v370 = vpack.c.b16 %v357, %v356
      %v371 = vpack.c.b16 %v359, %v358
      %v372 = vpack.c.b16 %v361, %v360
      %v373 = vpack.c.b16 %v363, %v362
      %v374 = vpack.c.b16 %v365, %v364
      %v375 = vpack.c.b16 %v367, %v366
      %384 = vmatprep.subr.bf16.mxu0 0
      %385 = vmatpush1.bf16.msra.mxu0 %v368
      %386 = vmatprep.subr.bf16.mxu0 0
      %387 = vmatpush1.bf16.msra.mxu0 %v369
      %388 = vmatprep.subr.bf16.mxu0 0
      %389 = vmatpush1.bf16.msra.mxu0 %v370
      %390 = vmatprep.subr.bf16.mxu0 0
      %391 = vmatpush1.bf16.msra.mxu0 %v371
      %392 = vmatprep.subr.bf16.mxu0 0
      %393 = vmatpush1.bf16.msra.mxu0 %v372
      %394 = vmatprep.subr.bf16.mxu0 0
      %395 = vmatpush1.bf16.msra.mxu0 %v373
      %396 = vmatprep.subr.bf16.mxu0 0
      %397 = vmatpush1.bf16.msra.mxu0 %v374
      %398 = vmatprep.subr.bf16.mxu0 0
      %399 = vmatpush1.bf16.msra.mxu0 %v375
      %400 = vmatprep.subr.bf16.mxu0 0
      %401 = vmatpush1.bf16.msra.mxu0 0
      %402 = vmatprep.subr.bf16.mxu0 0
      %403 = vmatpush1.bf16.msra.mxu0 0
      %404 = vmatprep.subr.bf16.mxu0 0
      %405 = vmatpush1.bf16.msra.mxu0 0
      %406 = vmatprep.subr.bf16.mxu0 0
      %407 = vmatpush1.bf16.msra.mxu0 0
      %408 = vmatprep.subr.bf16.mxu0 0
      %409 = vmatpush1.bf16.msra.mxu0 0
      %410 = vmatprep.subr.bf16.mxu0 0
      %411 = vmatpush1.bf16.msra.mxu0 0
      %412 = vmatprep.subr.bf16.mxu0 0
      %413 = vmatpush1.bf16.msra.mxu0 0
      %414 = vmatprep.subr.bf16.mxu0 0
      %415 = vmatpush1.bf16.msra.mxu0 0
      %416 = vmatprep.mubr.bf16.mxu0 0
      %417 = vmatmul.mubr.bf16.gmra.mrb[0].mxu0 %v210
      %v418 = vpop.f32.mrb[0].mxu0
      %v419 = vadd.f32 %v330, %v418
      %v420 = vpop.f32.mrb[0].mxu0
      %v421 = vpop.f32.mrb[0].mxu0
      %v422 = vadd.f32 %v333, %v421
      %v423 = vpop.f32.mrb[0].mxu0
      %424 = vdwg.mxu0
      %v425 = vld [vmem:[#allocation2 + $0x9] sm:$0xff]
      %v426 = vld [vmem:[#allocation2 + $0x11] sm:$0xff]
      %v427 = vpack.c.bf16 %v426, %v425
      %s428 = scalar_lea.vmem %s1, 128
      %v429 = vld [vmem:[%s428] sm:$0xf]
      %v430 = vld [vmem:[%s428 + $0x4] sm:$0xf]
      %v431 = vld [vmem:[%s428 + $0x8] sm:$0xf]
      %v432 = vld [vmem:[%s428 + $0xc] sm:$0xf]
      %v433 = vld [vmem:[%s428 + $0x10] sm:$0xf]
      %v434 = vld [vmem:[%s428 + $0x14] sm:$0xf]
      %v435 = vld [vmem:[%s428 + $0x18] sm:$0xf]
      %v436 = vld [vmem:[%s428 + $0x1c] sm:$0xf]
      %v437 = vld [vmem:[%s428 + $0x20] sm:$0xf]
      %v438 = vld [vmem:[%s428 + $0x24] sm:$0xf]
      %v439 = vld [vmem:[%s428 + $0x28] sm:$0xf]
      %v440 = vld [vmem:[%s428 + $0x2c] sm:$0xf]
      %v441 = vld [vmem:[%s428 + $0x30] sm:$0xf]
      %v442 = vld [vmem:[%s428 + $0x34] sm:$0xf]
      %v443 = vld [vmem:[%s428 + $0x38] sm:$0xf]
      %v444 = vld [vmem:[%s428 + $0x3c] sm:$0xf]
      %v461 = vunpack.c.l.b16 %v429
      %v462 = vunpack.c.l.b16 %v430
      %v463 = vunpack.c.l.b16 %v431
      %v464 = vunpack.c.l.b16 %v432
      %v465 = vunpack.c.l.b16 %v433
      %v466 = vunpack.c.l.b16 %v434
      %v467 = vunpack.c.l.b16 %v435
      %v468 = vunpack.c.l.b16 %v436
      %v469 = vunpack.c.l.b16 %v437
      %v470 = vunpack.c.l.b16 %v438
      %v471 = vunpack.c.l.b16 %v439
      %v472 = vunpack.c.l.b16 %v440
      %v473 = vunpack.c.l.b16 %v441
      %v474 = vunpack.c.l.b16 %v442
      %v475 = vunpack.c.l.b16 %v443
      %v476 = vunpack.c.l.b16 %v444
      %v477 = vpack.c.b16 %v462, %v461
      %v478 = vpack.c.b16 %v464, %v463
      %v479 = vpack.c.b16 %v466, %v465
      %v480 = vpack.c.b16 %v468, %v467
      %v481 = vpack.c.b16 %v470, %v469
      %v482 = vpack.c.b16 %v472, %v471
      %v483 = vpack.c.b16 %v474, %v473
      %v484 = vpack.c.b16 %v476, %v475
      %493 = vmatprep.subr.bf16.mxu0 0
      %494 = vmatpush1.bf16.msra.mxu0 %v477
      %495 = vmatprep.subr.bf16.mxu0 0
      %496 = vmatpush1.bf16.msra.mxu0 %v478
      %497 = vmatprep.subr.bf16.mxu0 0
      %498 = vmatpush1.bf16.msra.mxu0 %v479
      %499 = vmatprep.subr.bf16.mxu0 0
      %500 = vmatpush1.bf16.msra.mxu0 %v480
      %501 = vmatprep.subr.bf16.mxu0 0
      %502 = vmatpush1.bf16.msra.mxu0 %v481
      %503 = vmatprep.subr.bf16.mxu0 0
      %504 = vmatpush1.bf16.msra.mxu0 %v482
      %505 = vmatprep.subr.bf16.mxu0 0
      %506 = vmatpush1.bf16.msra.mxu0 %v483
      %507 = vmatprep.subr.bf16.mxu0 0
      %508 = vmatpush1.bf16.msra.mxu0 %v484
      %509 = vmatprep.subr.bf16.mxu0 0
      %510 = vmatpush1.bf16.msra.mxu0 0
      %511 = vmatprep.subr.bf16.mxu0 0
      %512 = vmatpush1.bf16.msra.mxu0 0
      %513 = vmatprep.subr.bf16.mxu0 0
      %514 = vmatpush1.bf16.msra.mxu0 0
      %515 = vmatprep.subr.bf16.mxu0 0
      %516 = vmatpush1.bf16.msra.mxu0 0
      %517 = vmatprep.subr.bf16.mxu0 0
      %518 = vmatpush1.bf16.msra.mxu0 0
      %519 = vmatprep.subr.bf16.mxu0 0
      %520 = vmatpush1.bf16.msra.mxu0 0
      %521 = vmatprep.subr.bf16.mxu0 0
      %522 = vmatpush1.bf16.msra.mxu0 0
      %523 = vmatprep.subr.bf16.mxu0 0
      %524 = vmatpush1.bf16.msra.mxu0 0
      %525 = vmatprep.mubr.bf16.mxu0 0
      %526 = vmatmul.mubr.bf16.gmra.mrb[0].mxu0 %v427
      %v527 = vpop.f32.mrb[0].mxu0
      %v528 = vadd.f32 0.0, %v527
      %v529 = vpop.f32.mrb[0].mxu0
      %v530 = vpop.f32.mrb[0].mxu0
      %v531 = vadd.f32 0.0, %v530
      %v532 = vpop.f32.mrb[0].mxu0
      %533 = vdwg.mxu0
      %v534 = vadd.f32 %v419, %v528
      %v535 = vadd.f32 %v422, %v531
      %v537 = vlaneseq
      %v538 = vshrl.u32 %v537, 7
      %v539 = vsub.s32 0, %v538
      %v540 = vrot.slane %v207, %v539
      %v542 = vadd.f32 %v534, %v540
      %v543 = vadd.f32 %v535, %v540
      %v544 = vmax.f32 %v542, 0.0
      %v545 = vmax.f32 %v543, 0.0
      %546 = vst [vmem:[#allocation3 + $0x8] sm:$0xff] %v544
      %547 = vst [vmem:[#allocation3 + $0x10] sm:$0xff] %v545
      %s548 = scalar_lea.vmem %s3, 1
      %v549 = vld [vmem:[%s548] sm:$0x1]
      %v550 = vld [vmem:[#allocation3 + $0x6] sm:$0xff]
      %v551 = vld [vmem:[#allocation3 + $0xe] sm:$0xff]
      %v552 = vpack.c.bf16 %v551, %v550
      %s553 = scalar_lea.vmem %s1, 192
      %v554 = vld [vmem:[%s553] sm:$0xf]
      %v555 = vld [vmem:[%s553 + $0x4] sm:$0xf]
      %v556 = vld [vmem:[%s553 + $0x8] sm:$0xf]
      %v557 = vld [vmem:[%s553 + $0xc] sm:$0xf]
      %v558 = vld [vmem:[%s553 + $0x10] sm:$0xf]
      %v559 = vld [vmem:[%s553 + $0x14] sm:$0xf]
      %v560 = vld [vmem:[%s553 + $0x18] sm:$0xf]
      %v561 = vld [vmem:[%s553 + $0x1c] sm:$0xf]
      %v562 = vld [vmem:[%s553 + $0x20] sm:$0xf]
      %v563 = vld [vmem:[%s553 + $0x24] sm:$0xf]
      %v564 = vld [vmem:[%s553 + $0x28] sm:$0xf]
      %v565 = vld [vmem:[%s553 + $0x2c] sm:$0xf]
      %v566 = vld [vmem:[%s553 + $0x30] sm:$0xf]
      %v567 = vld [vmem:[%s553 + $0x34] sm:$0xf]
      %v568 = vld [vmem:[%s553 + $0x38] sm:$0xf]
      %v569 = vld [vmem:[%s553 + $0x3c] sm:$0xf]
      %v570 = vld [vmem:[#allocation3 + $0x8] sm:$0xff]
      %v571 = vld [vmem:[#allocation3 + $0x10] sm:$0xff]
      %v572 = vpack.c.bf16 %v571, %v570
      %s573 = scalar_lea.vmem %s1, 256
      %v574 = vld [vmem:[%s573] sm:$0xf]
      %v575 = vld [vmem:[%s573 + $0x4] sm:$0xf]
      %v576 = vld [vmem:[%s573 + $0x8] sm:$0xf]
      %v577 = vld [vmem:[%s573 + $0xc] sm:$0xf]
      %v578 = vld [vmem:[%s573 + $0x10] sm:$0xf]
      %v579 = vld [vmem:[%s573 + $0x14] sm:$0xf]
      %v580 = vld [vmem:[%s573 + $0x18] sm:$0xf]
      %v581 = vld [vmem:[%s573 + $0x1c] sm:$0xf]
      %v582 = vld [vmem:[%s573 + $0x20] sm:$0xf]
      %v583 = vld [vmem:[%s573 + $0x24] sm:$0xf]
      %v584 = vld [vmem:[%s573 + $0x28] sm:$0xf]
      %v585 = vld [vmem:[%s573 + $0x2c] sm:$0xf]
      %v586 = vld [vmem:[%s573 + $0x30] sm:$0xf]
      %v587 = vld [vmem:[%s573 + $0x34] sm:$0xf]
      %v588 = vld [vmem:[%s573 + $0x38] sm:$0xf]
      %v589 = vld [vmem:[%s573 + $0x3c] sm:$0xf]
      %v606 = vunpack.c.l.b16 %v574
      %v607 = vunpack.c.l.b16 %v575
      %v608 = vunpack.c.l.b16 %v576
      %v609 = vunpack.c.l.b16 %v577
      %v610 = vunpack.c.l.b16 %v578
      %v611 = vunpack.c.l.b16 %v579
      %v612 = vunpack.c.l.b16 %v580
      %v613 = vunpack.c.l.b16 %v581
      %v614 = vunpack.c.l.b16 %v582
      %v615 = vunpack.c.l.b16 %v583
      %v616 = vunpack.c.l.b16 %v584
      %v617 = vunpack.c.l.b16 %v585
      %v618 = vunpack.c.l.b16 %v586
      %v619 = vunpack.c.l.b16 %v587
      %v620 = vunpack.c.l.b16 %v588
      %v621 = vunpack.c.l.b16 %v589
      %v622 = vpack.c.b16 %v607, %v606
      %v623 = vpack.c.b16 %v609, %v608
      %v624 = vpack.c.b16 %v611, %v610
      %v625 = vpack.c.b16 %v613, %v612
      %v626 = vpack.c.b16 %v615, %v614
      %v627 = vpack.c.b16 %v617, %v616
      %v628 = vpack.c.b16 %v619, %v618
      %v629 = vpack.c.b16 %v621, %v620
      %638 = vmatprep.subr.bf16.mxu0 0
      %639 = vmatpush1.bf16.msra.mxu0 %v622
      %640 = vmatprep.subr.bf16.mxu0 0
      %641 = vmatpush1.bf16.msra.mxu0 %v623
      %642 = vmatprep.subr.bf16.mxu0 0
      %643 = vmatpush1.bf16.msra.mxu0 %v624
      %644 = vmatprep.subr.bf16.mxu0 0
      %645 = vmatpush1.bf16.msra.mxu0 %v625
      %646 = vmatprep.subr.bf16.mxu0 0
      %647 = vmatpush1.bf16.msra.mxu0 %v626
      %648 = vmatprep.subr.bf16.mxu0 0
      %649 = vmatpush1.bf16.msra.mxu0 %v627
      %650 = vmatprep.subr.bf16.mxu0 0
      %651 = vmatpush1.bf16.msra.mxu0 %v628
      %652 = vmatprep.subr.bf16.mxu0 0
      %653 = vmatpush1.bf16.msra.mxu0 %v629
      %654 = vmatprep.subr.bf16.mxu0 0
      %655 = vmatpush1.bf16.msra.mxu0 0
      %656 = vmatprep.subr.bf16.mxu0 0
      %657 = vmatpush1.bf16.msra.mxu0 0
      %658 = vmatprep.subr.bf16.mxu0 0
      %659 = vmatpush1.bf16.msra.mxu0 0
      %660 = vmatprep.subr.bf16.mxu0 0
      %661 = vmatpush1.bf16.msra.mxu0 0
      %662 = vmatprep.subr.bf16.mxu0 0
      %663 = vmatpush1.bf16.msra.mxu0 0
      %664 = vmatprep.subr.bf16.mxu0 0
      %665 = vmatpush1.bf16.msra.mxu0 0
      %666 = vmatprep.subr.bf16.mxu0 0
      %667 = vmatpush1.bf16.msra.mxu0 0
      %668 = vmatprep.subr.bf16.mxu0 0
      %669 = vmatpush1.bf16.msra.mxu0 0
      %670 = vmatprep.mubr.bf16.mxu0 0
      %671 = vmatmul.mubr.bf16.gmra.mrb[0].mxu0 %v572
      %v672 = vpop.f32.mrb[0].mxu0
      %v673 = vadd.f32 0.0, %v672
      %v674 = vpop.f32.mrb[0].mxu0
      %v675 = vpop.f32.mrb[0].mxu0
      %v676 = vadd.f32 0.0, %v675
      %v677 = vpop.f32.mrb[0].mxu0
      %678 = vdwg.mxu0
      %v695 = vunpack.c.l.b16 %v554
      %v696 = vunpack.c.l.b16 %v555
      %v697 = vunpack.c.l.b16 %v556
      %v698 = vunpack.c.l.b16 %v557
      %v699 = vunpack.c.l.b16 %v558
      %v700 = vunpack.c.l.b16 %v559
      %v701 = vunpack.c.l.b16 %v560
      %v702 = vunpack.c.l.b16 %v561
      %v703 = vunpack.c.l.b16 %v562
      %v704 = vunpack.c.l.b16 %v563
      %v705 = vunpack.c.l.b16 %v564
      %v706 = vunpack.c.l.b16 %v565
      %v707 = vunpack.c.l.b16 %v566
      %v708 = vunpack.c.l.b16 %v567
      %v709 = vunpack.c.l.b16 %v568
      %v710 = vunpack.c.l.b16 %v569
      %v711 = vpack.c.b16 %v696, %v695
      %v712 = vpack.c.b16 %v698, %v697
      %v713 = vpack.c.b16 %v700, %v699
      %v714 = vpack.c.b16 %v702, %v701
      %v715 = vpack.c.b16 %v704, %v703
      %v716 = vpack.c.b16 %v706, %v705
      %v717 = vpack.c.b16 %v708, %v707
      %v718 = vpack.c.b16 %v710, %v709
      %727 = vmatprep.subr.bf16.mxu0 0
      %728 = vmatpush1.bf16.msra.mxu0 %v711
      %729 = vmatprep.subr.bf16.mxu0 0
      %730 = vmatpush1.bf16.msra.mxu0 %v712
      %731 = vmatprep.subr.bf16.mxu0 0
      %732 = vmatpush1.bf16.msra.mxu0 %v713
      %733 = vmatprep.subr.bf16.mxu0 0
      %734 = vmatpush1.bf16.msra.mxu0 %v714
      %735 = vmatprep.subr.bf16.mxu0 0
      %736 = vmatpush1.bf16.msra.mxu0 %v715
      %737 = vmatprep.subr.bf16.mxu0 0
      %738 = vmatpush1.bf16.msra.mxu0 %v716
      %739 = vmatprep.subr.bf16.mxu0 0
      %740 = vmatpush1.bf16.msra.mxu0 %v717
      %741 = vmatprep.subr.bf16.mxu0 0
      %742 = vmatpush1.bf16.msra.mxu0 %v718
      %743 = vmatprep.subr.bf16.mxu0 0
      %744 = vmatpush1.bf16.msra.mxu0 0
      %745 = vmatprep.subr.bf16.mxu0 0
      %746 = vmatpush1.bf16.msra.mxu0 0
      %747 = vmatprep.subr.bf16.mxu0 0
      %748 = vmatpush1.bf16.msra.mxu0 0
      %749 = vmatprep.subr.bf16.mxu0 0
      %750 = vmatpush1.bf16.msra.mxu0 0
      %751 = vmatprep.subr.bf16.mxu0 0
      %752 = vmatpush1.bf16.msra.mxu0 0
      %753 = vmatprep.subr.bf16.mxu0 0
      %754 = vmatpush1.bf16.msra.mxu0 0
      %755 = vmatprep.subr.bf16.mxu0 0
      %756 = vmatpush1.bf16.msra.mxu0 0
      %757 = vmatprep.subr.bf16.mxu0 0
      %758 = vmatpush1.bf16.msra.mxu0 0
      %759 = vmatprep.mubr.bf16.mxu0 0
      %760 = vmatmul.mubr.bf16.gmra.mrb[0].mxu0 %v552
      %v761 = vpop.f32.mrb[0].mxu0
      %v762 = vadd.f32 %v673, %v761
      %v763 = vpop.f32.mrb[0].mxu0
      %v764 = vpop.f32.mrb[0].mxu0
      %v765 = vadd.f32 %v676, %v764
      %v766 = vpop.f32.mrb[0].mxu0
      %767 = vdwg.mxu0
      %v768 = vld [vmem:[#allocation3 + $0xa] sm:$0xff]
      %v769 = vld [vmem:[#allocation3 + $0x12] sm:$0xff]
      %v770 = vpack.c.bf16 %v769, %v768
      %s771 = scalar_lea.vmem %s1, 320
      %v772 = vld [vmem:[%s771] sm:$0xf]
      %v773 = vld [vmem:[%s771 + $0x4] sm:$0xf]
      %v774 = vld [vmem:[%s771 + $0x8] sm:$0xf]
      %v775 = vld [vmem:[%s771 + $0xc] sm:$0xf]
      %v776 = vld [vmem:[%s771 + $0x10] sm:$0xf]
      %v777 = vld [vmem:[%s771 + $0x14] sm:$0xf]
      %v778 = vld [vmem:[%s771 + $0x18] sm:$0xf]
      %v779 = vld [vmem:[%s771 + $0x1c] sm:$0xf]
      %v780 = vld [vmem:[%s771 + $0x20] sm:$0xf]
      %v781 = vld [vmem:[%s771 + $0x24] sm:$0xf]
      %v782 = vld [vmem:[%s771 + $0x28] sm:$0xf]
      %v783 = vld [vmem:[%s771 + $0x2c] sm:$0xf]
      %v784 = vld [vmem:[%s771 + $0x30] sm:$0xf]
      %v785 = vld [vmem:[%s771 + $0x34] sm:$0xf]
      %v786 = vld [vmem:[%s771 + $0x38] sm:$0xf]
      %v787 = vld [vmem:[%s771 + $0x3c] sm:$0xf]
      %v804 = vunpack.c.l.b16 %v772
      %v805 = vunpack.c.l.b16 %v773
      %v806 = vunpack.c.l.b16 %v774
      %v807 = vunpack.c.l.b16 %v775
      %v808 = vunpack.c.l.b16 %v776
      %v809 = vunpack.c.l.b16 %v777
      %v810 = vunpack.c.l.b16 %v778
      %v811 = vunpack.c.l.b16 %v779
      %v812 = vunpack.c.l.b16 %v780
      %v813 = vunpack.c.l.b16 %v781
      %v814 = vunpack.c.l.b16 %v782
      %v815 = vunpack.c.l.b16 %v783
      %v816 = vunpack.c.l.b16 %v784
      %v817 = vunpack.c.l.b16 %v785
      %v818 = vunpack.c.l.b16 %v786
      %v819 = vunpack.c.l.b16 %v787
      %v820 = vpack.c.b16 %v805, %v804
      %v821 = vpack.c.b16 %v807, %v806
      %v822 = vpack.c.b16 %v809, %v808
      %v823 = vpack.c.b16 %v811, %v810
      %v824 = vpack.c.b16 %v813, %v812
      %v825 = vpack.c.b16 %v815, %v814
      %v826 = vpack.c.b16 %v817, %v816
      %v827 = vpack.c.b16 %v819, %v818
      %836 = vmatprep.subr.bf16.mxu0 0
      %837 = vmatpush1.bf16.msra.mxu0 %v820
      %838 = vmatprep.subr.bf16.mxu0 0
      %839 = vmatpush1.bf16.msra.mxu0 %v821
      %840 = vmatprep.subr.bf16.mxu0 0
      %841 = vmatpush1.bf16.msra.mxu0 %v822
      %842 = vmatprep.subr.bf16.mxu0 0
      %843 = vmatpush1.bf16.msra.mxu0 %v823
      %844 = vmatprep.subr.bf16.mxu0 0
      %845 = vmatpush1.bf16.msra.mxu0 %v824
      %846 = vmatprep.subr.bf16.mxu0 0
      %847 = vmatpush1.bf16.msra.mxu0 %v825
      %848 = vmatprep.subr.bf16.mxu0 0
      %849 = vmatpush1.bf16.msra.mxu0 %v826
      %850 = vmatprep.subr.bf16.mxu0 0
      %851 = vmatpush1.bf16.msra.mxu0 %v827
      %852 = vmatprep.subr.bf16.mxu0 0
      %853 = vmatpush1.bf16.msra.mxu0 0
      %854 = vmatprep.subr.bf16.mxu0 0
      %855 = vmatpush1.bf16.msra.mxu0 0
      %856 = vmatprep.subr.bf16.mxu0 0
      %857 = vmatpush1.bf16.msra.mxu0 0
      %858 = vmatprep.subr.bf16.mxu0 0
      %859 = vmatpush1.bf16.msra.mxu0 0
      %860 = vmatprep.subr.bf16.mxu0 0
      %861 = vmatpush1.bf16.msra.mxu0 0
      %862 = vmatprep.subr.bf16.mxu0 0
      %863 = vmatpush1.bf16.msra.mxu0 0
      %864 = vmatprep.subr.bf16.mxu0 0
      %865 = vmatpush1.bf16.msra.mxu0 0
      %866 = vmatprep.subr.bf16.mxu0 0
      %867 = vmatpush1.bf16.msra.mxu0 0
      %868 = vmatprep.mubr.bf16.mxu0 0
      %869 = vmatmul.mubr.bf16.gmra.mrb[0].mxu0 %v770
      %v870 = vpop.f32.mrb[0].mxu0
      %v871 = vadd.f32 0.0, %v870
      %v872 = vpop.f32.mrb[0].mxu0
      %v873 = vpop.f32.mrb[0].mxu0
      %v874 = vadd.f32 0.0, %v873
      %v875 = vpop.f32.mrb[0].mxu0
      %876 = vdwg.mxu0
      %v877 = vadd.f32 %v762, %v871
      %v878 = vadd.f32 %v765, %v874
      %v880 = vlaneseq
      %v881 = vshrl.u32 %v880, 7
      %v882 = vsub.s32 0, %v881
      %v883 = vrot.slane %v549, %v882
      %v885 = vadd.f32 %v877, %v883
      %v886 = vadd.f32 %v878, %v883
      %v887 = vmax.f32 %v885, 0.0
      %v888 = vmax.f32 %v886, 0.0
      %s889 = scalar_lea.vmem %s3, 2
      %v890 = vld [vmem:[%s889] sm:$0x1]
      %v891 = vld [vmem:[#allocation2 + $0x5] sm:$0xff]
      %v892 = vld [vmem:[#allocation2 + $0xd] sm:$0xff]
      %v893 = vpack.c.bf16 %v892, %v891
      %s894 = scalar_lea.vmem %s1, 384
      %v895 = vld [vmem:[%s894] sm:$0xf]
      %v896 = vld [vmem:[%s894 + $0x4] sm:$0xf]
      %v897 = vld [vmem:[%s894 + $0x8] sm:$0xf]
      %v898 = vld [vmem:[%s894 + $0xc] sm:$0xf]
      %v899 = vld [vmem:[%s894 + $0x10] sm:$0xf]
      %v900 = vld [vmem:[%s894 + $0x14] sm:$0xf]
      %v901 = vld [vmem:[%s894 + $0x18] sm:$0xf]
      %v902 = vld [vmem:[%s894 + $0x1c] sm:$0xf]
      %v903 = vld [vmem:[%s894 + $0x20] sm:$0xf]
      %v904 = vld [vmem:[%s894 + $0x24] sm:$0xf]
      %v905 = vld [vmem:[%s894 + $0x28] sm:$0xf]
      %v906 = vld [vmem:[%s894 + $0x2c] sm:$0xf]
      %v907 = vld [vmem:[%s894 + $0x30] sm:$0xf]
      %v908 = vld [vmem:[%s894 + $0x34] sm:$0xf]
      %v909 = vld [vmem:[%s894 + $0x38] sm:$0xf]
      %v910 = vld [vmem:[%s894 + $0x3c] sm:$0xf]
      %v911 = vld [vmem:[#allocation2 + $0x8] sm:$0xff]
      %v912 = vld [vmem:[#allocation2 + $0x10] sm:$0xff]
      %v913 = vpack.c.bf16 %v912, %v911
      %s914 = scalar_lea.vmem %s1, 448
      %v915 = vld [vmem:[%s914] sm:$0xf]
      %v916 = vld [vmem:[%s914 + $0x4] sm:$0xf]
      %v917 = vld [vmem:[%s914 + $0x8] sm:$0xf]
      %v918 = vld [vmem:[%s914 + $0xc] sm:$0xf]
      %v919 = vld [vmem:[%s914 + $0x10] sm:$0xf]
      %v920 = vld [vmem:[%s914 + $0x14] sm:$0xf]
      %v921 = vld [vmem:[%s914 + $0x18] sm:$0xf]
      %v922 = vld [vmem:[%s914 + $0x1c] sm:$0xf]
      %v923 = vld [vmem:[%s914 + $0x20] sm:$0xf]
      %v924 = vld [vmem:[%s914 + $0x24] sm:$0xf]
      %v925 = vld [vmem:[%s914 + $0x28] sm:$0xf]
      %v926 = vld [vmem:[%s914 + $0x2c] sm:$0xf]
      %v927 = vld [vmem:[%s914 + $0x30] sm:$0xf]
      %v928 = vld [vmem:[%s914 + $0x34] sm:$0xf]
      %v929 = vld [vmem:[%s914 + $0x38] sm:$0xf]
      %v930 = vld [vmem:[%s914 + $0x3c] sm:$0xf]
      %v947 = vunpack.c.l.b16 %v915
      %v948 = vunpack.c.l.b16 %v916
      %v949 = vunpack.c.l.b16 %v917
      %v950 = vunpack.c.l.b16 %v918
      %v951 = vunpack.c.l.b16 %v919
      %v952 = vunpack.c.l.b16 %v920
      %v953 = vunpack.c.l.b16 %v921
      %v954 = vunpack.c.l.b16 %v922
      %v955 = vunpack.c.l.b16 %v923
      %v956 = vunpack.c.l.b16 %v924
      %v957 = vunpack.c.l.b16 %v925
      %v958 = vunpack.c.l.b16 %v926
      %v959 = vunpack.c.l.b16 %v927
      %v960 = vunpack.c.l.b16 %v928
      %v961 = vunpack.c.l.b16 %v929
      %v962 = vunpack.c.l.b16 %v930
      %v963 = vpack.c.b16 %v948, %v947
      %v964 = vpack.c.b16 %v950, %v949
      %v965 = vpack.c.b16 %v952, %v951
      %v966 = vpack.c.b16 %v954, %v953
      %v967 = vpack.c.b16 %v956, %v955
      %v968 = vpack.c.b16 %v958, %v957
      %v969 = vpack.c.b16 %v960, %v959
      %v970 = vpack.c.b16 %v962, %v961
      %979 = vmatprep.subr.bf16.mxu0 0
      %980 = vmatpush1.bf16.msra.mxu0 %v963
      %981 = vmatprep.subr.bf16.mxu0 0
      %982 = vmatpush1.bf16.msra.mxu0 %v964
      %983 = vmatprep.subr.bf16.mxu0 0
      %984 = vmatpush1.bf16.msra.mxu0 %v965
      %985 = vmatprep.subr.bf16.mxu0 0
      %986 = vmatpush1.bf16.msra.mxu0 %v966
      %987 = vmatprep.subr.bf16.mxu0 0
      %988 = vmatpush1.bf16.msra.mxu0 %v967
      %989 = vmatprep.subr.bf16.mxu0 0
      %990 = vmatpush1.bf16.msra.mxu0 %v968
      %991 = vmatprep.subr.bf16.mxu0 0
      %992 = vmatpush1.bf16.msra.mxu0 %v969
      %993 = vmatprep.subr.bf16.mxu0 0
      %994 = vmatpush1.bf16.msra.mxu0 %v970
      %995 = vmatprep.subr.bf16.mxu0 0
      %996 = vmatpush1.bf16.msra.mxu0 0
      %997 = vmatprep.subr.bf16.mxu0 0
      %998 = vmatpush1.bf16.msra.mxu0 0
      %999 = vmatprep.subr.bf16.mxu0 0
      %1000 = vmatpush1.bf16.msra.mxu0 0
      %1001 = vmatprep.subr.bf16.mxu0 0
      %1002 = vmatpush1.bf16.msra.mxu0 0
      %1003 = vmatprep.subr.bf16.mxu0 0
      %1004 = vmatpush1.bf16.msra.mxu0 0
      %1005 = vmatprep.subr.bf16.mxu0 0
      %1006 = vmatpush1.bf16.msra.mxu0 0
      %1007 = vmatprep.subr.bf16.mxu0 0
      %1008 = vmatpush1.bf16.msra.mxu0 0
      %1009 = vmatprep.subr.bf16.mxu0 0
      %1010 = vmatpush1.bf16.msra.mxu0 0
      %1011 = vmatprep.mubr.bf16.mxu0 0
      %1012 = vmatmul.mubr.bf16.gmra.mrb[0].mxu0 %v913
      %v1013 = vpop.f32.mrb[0].mxu0
      %v1014 = vadd.f32 0.0, %v1013
      %v1015 = vpop.f32.mrb[0].mxu0
      %v1016 = vpop.f32.mrb[0].mxu0
      %v1017 = vadd.f32 0.0, %v1016
      %v1018 = vpop.f32.mrb[0].mxu0
      %1019 = vdwg.mxu0
      %v1036 = vunpack.c.l.b16 %v895
      %v1037 = vunpack.c.l.b16 %v896
      %v1038 = vunpack.c.l.b16 %v897
      %v1039 = vunpack.c.l.b16 %v898
      %v1040 = vunpack.c.l.b16 %v899
      %v1041 = vunpack.c.l.b16 %v900
      %v1042 = vunpack.c.l.b16 %v901
      %v1043 = vunpack.c.l.b16 %v902
      %v1044 = vunpack.c.l.b16 %v903
      %v1045 = vunpack.c.l.b16 %v904
      %v1046 = vunpack.c.l.b16 %v905
      %v1047 = vunpack.c.l.b16 %v906
      %v1048 = vunpack.c.l.b16 %v907
      %v1049 = vunpack.c.l.b16 %v908
      %v1050 = vunpack.c.l.b16 %v909
      %v1051 = vunpack.c.l.b16 %v910
      %v1052 = vpack.c.b16 %v1037, %v1036
      %v1053 = vpack.c.b16 %v1039, %v1038
      %v1054 = vpack.c.b16 %v1041, %v1040
      %v1055 = vpack.c.b16 %v1043, %v1042
      %v1056 = vpack.c.b16 %v1045, %v1044
      %v1057 = vpack.c.b16 %v1047, %v1046
      %v1058 = vpack.c.b16 %v1049, %v1048
      %v1059 = vpack.c.b16 %v1051, %v1050
      %1068 = vmatprep.subr.bf16.mxu0 0
      %1069 = vmatpush1.bf16.msra.mxu0 %v1052
      %1070 = vmatprep.subr.bf16.mxu0 0
      %1071 = vmatpush1.bf16.msra.mxu0 %v1053
      %1072 = vmatprep.subr.bf16.mxu0 0
      %1073 = vmatpush1.bf16.msra.mxu0 %v1054
      %1074 = vmatprep.subr.bf16.mxu0 0
      %1075 = vmatpush1.bf16.msra.mxu0 %v1055
      %1076 = vmatprep.subr.bf16.mxu0 0
      %1077 = vmatpush1.bf16.msra.mxu0 %v1056
      %1078 = vmatprep.subr.bf16.mxu0 0
      %1079 = vmatpush1.bf16.msra.mxu0 %v1057
      %1080 = vmatprep.subr.bf16.mxu0 0
      %1081 = vmatpush1.bf16.msra.mxu0 %v1058
      %1082 = vmatprep.subr.bf16.mxu0 0
      %1083 = vmatpush1.bf16.msra.mxu0 %v1059
      %1084 = vmatprep.subr.bf16.mxu0 0
      %1085 = vmatpush1.bf16.msra.mxu0 0
      %1086 = vmatprep.subr.bf16.mxu0 0
      %1087 = vmatpush1.bf16.msra.mxu0 0
      %1088 = vmatprep.subr.bf16.mxu0 0
      %1089 = vmatpush1.bf16.msra.mxu0 0
      %1090 = vmatprep.subr.bf16.mxu0 0
      %1091 = vmatpush1.bf16.msra.mxu0 0
      %1092 = vmatprep.subr.bf16.mxu0 0
      %1093 = vmatpush1.bf16.msra.mxu0 0
      %1094 = vmatprep.subr.bf16.mxu0 0
      %1095 = vmatpush1.bf16.msra.mxu0 0
      %1096 = vmatprep.subr.bf16.mxu0 0
      %1097 = vmatpush1.bf16.msra.mxu0 0
      %1098 = vmatprep.subr.bf16.mxu0 0
      %1099 = vmatpush1.bf16.msra.mxu0 0
      %1100 = vmatprep.mubr.bf16.mxu0 0
      %1101 = vmatmul.mubr.bf16.gmra.mrb[0].mxu0 %v893
      %v1102 = vpop.f32.mrb[0].mxu0
      %v1103 = vadd.f32 %v1014, %v1102
      %v1104 = vpop.f32.mrb[0].mxu0
      %v1105 = vpop.f32.mrb[0].mxu0
      %v1106 = vadd.f32 %v1017, %v1105
      %v1107 = vpop.f32.mrb[0].mxu0
      %1108 = vdwg.mxu0
      %v1109 = vld [vmem:[#allocation2 + $0xb] sm:$0xff]
      %v1110 = vld [vmem:[#allocation2 + $0x13] sm:$0xff]
      %v1111 = vpack.c.bf16 %v1110, %v1109
      %s1112 = scalar_lea.vmem %s1, 512
      %v1113 = vld [vmem:[%s1112] sm:$0xf]
      %v1114 = vld [vmem:[%s1112 + $0x4] sm:$0xf]
      %v1115 = vld [vmem:[%s1112 + $0x8] sm:$0xf]
      %v1116 = vld [vmem:[%s1112 + $0xc] sm:$0xf]
      %v1117 = vld [vmem:[%s1112 + $0x10] sm:$0xf]
      %v1118 = vld [vmem:[%s1112 + $0x14] sm:$0xf]
      %v1119 = vld [vmem:[%s1112 + $0x18] sm:$0xf]
      %v1120 = vld [vmem:[%s1112 + $0x1c] sm:$0xf]
      %v1121 = vld [vmem:[%s1112 + $0x20] sm:$0xf]
      %v1122 = vld [vmem:[%s1112 + $0x24] sm:$0xf]
      %v1123 = vld [vmem:[%s1112 + $0x28] sm:$0xf]
      %v1124 = vld [vmem:[%s1112 + $0x2c] sm:$0xf]
      %v1125 = vld [vmem:[%s1112 + $0x30] sm:$0xf]
      %v1126 = vld [vmem:[%s1112 + $0x34] sm:$0xf]
      %v1127 = vld [vmem:[%s1112 + $0x38] sm:$0xf]
      %v1128 = vld [vmem:[%s1112 + $0x3c] sm:$0xf]
      %v1145 = vunpack.c.l.b16 %v1113
      %v1146 = vunpack.c.l.b16 %v1114
      %v1147 = vunpack.c.l.b16 %v1115
      %v1148 = vunpack.c.l.b16 %v1116
      %v1149 = vunpack.c.l.b16 %v1117
      %v1150 = vunpack.c.l.b16 %v1118
      %v1151 = vunpack.c.l.b16 %v1119
      %v1152 = vunpack.c.l.b16 %v1120
      %v1153 = vunpack.c.l.b16 %v1121
      %v1154 = vunpack.c.l.b16 %v1122
      %v1155 = vunpack.c.l.b16 %v1123
      %v1156 = vunpack.c.l.b16 %v1124
      %v1157 = vunpack.c.l.b16 %v1125
      %v1158 = vunpack.c.l.b16 %v1126
      %v1159 = vunpack.c.l.b16 %v1127
      %v1160 = vunpack.c.l.b16 %v1128
      %v1161 = vpack.c.b16 %v1146, %v1145
      %v1162 = vpack.c.b16 %v1148, %v1147
      %v1163 = vpack.c.b16 %v1150, %v1149
      %v1164 = vpack.c.b16 %v1152, %v1151
      %v1165 = vpack.c.b16 %v1154, %v1153
      %v1166 = vpack.c.b16 %v1156, %v1155
      %v1167 = vpack.c.b16 %v1158, %v1157
      %v1168 = vpack.c.b16 %v1160, %v1159
      %1177 = vmatprep.subr.bf16.mxu0 0
      %1178 = vmatpush1.bf16.msra.mxu0 %v1161
      %1179 = vmatprep.subr.bf16.mxu0 0
      %1180 = vmatpush1.bf16.msra.mxu0 %v1162
      %1181 = vmatprep.subr.bf16.mxu0 0
      %1182 = vmatpush1.bf16.msra.mxu0 %v1163
      %1183 = vmatprep.subr.bf16.mxu0 0
      %1184 = vmatpush1.bf16.msra.mxu0 %v1164
      %1185 = vmatprep.subr.bf16.mxu0 0
      %1186 = vmatpush1.bf16.msra.mxu0 %v1165
      %1187 = vmatprep.subr.bf16.mxu0 0
      %1188 = vmatpush1.bf16.msra.mxu0 %v1166
      %1189 = vmatprep.subr.bf16.mxu0 0
      %1190 = vmatpush1.bf16.msra.mxu0 %v1167
      %1191 = vmatprep.subr.bf16.mxu0 0
      %1192 = vmatpush1.bf16.msra.mxu0 %v1168
      %1193 = vmatprep.subr.bf16.mxu0 0
      %1194 = vmatpush1.bf16.msra.mxu0 0
      %1195 = vmatprep.subr.bf16.mxu0 0
      %1196 = vmatpush1.bf16.msra.mxu0 0
      %1197 = vmatprep.subr.bf16.mxu0 0
      %1198 = vmatpush1.bf16.msra.mxu0 0
      %1199 = vmatprep.subr.bf16.mxu0 0
      %1200 = vmatpush1.bf16.msra.mxu0 0
      %1201 = vmatprep.subr.bf16.mxu0 0
      %1202 = vmatpush1.bf16.msra.mxu0 0
      %1203 = vmatprep.subr.bf16.mxu0 0
      %1204 = vmatpush1.bf16.msra.mxu0 0
      %1205 = vmatprep.subr.bf16.mxu0 0
      %1206 = vmatpush1.bf16.msra.mxu0 0
      %1207 = vmatprep.subr.bf16.mxu0 0
      %1208 = vmatpush1.bf16.msra.mxu0 0
      %1209 = vmatprep.mubr.bf16.mxu0 0
      %1210 = vmatmul.mubr.bf16.gmra.mrb[0].mxu0 %v1111
      %v1211 = vpop.f32.mrb[0].mxu0
      %v1212 = vadd.f32 0.0, %v1211
      %v1213 = vpop.f32.mrb[0].mxu0
      %v1214 = vpop.f32.mrb[0].mxu0
      %v1215 = vadd.f32 0.0, %v1214
      %v1216 = vpop.f32.mrb[0].mxu0
      %1217 = vdwg.mxu0
      %v1218 = vadd.f32 %v1103, %v1212
      %v1219 = vadd.f32 %v1106, %v1215
      %v1221 = vlaneseq
      %v1222 = vshrl.u32 %v1221, 7
      %v1223 = vsub.s32 0, %v1222
      %v1224 = vrot.slane %v890, %v1223
      %v1226 = vadd.f32 %v1218, %v1224
      %v1227 = vadd.f32 %v1219, %v1224
      %v1228 = vmax.f32 %v1226, 0.0
      %v1229 = vmax.f32 %v1227, 0.0
      %1230 = vst [vmem:[#allocation3 + $0x8] sm:$0xff] %v1228
      %1231 = vst [vmem:[#allocation3 + $0x10] sm:$0xff] %v1229
      %s1232 = scalar_lea.vmem %s3, 3
      %v1233 = vld [vmem:[%s1232] sm:$0x1]
      %v1234 = vld [vmem:[#allocation3 + $0x4] sm:$0xff]
      %v1235 = vld [vmem:[#allocation3 + $0xc] sm:$0xff]
      %v1236 = vpack.c.bf16 %v1235, %v1234
      %s1237 = scalar_lea.vmem %s1, 576
      %v1238 = vld [vmem:[%s1237] sm:$0xf]
      %v1239 = vld [vmem:[%s1237 + $0x4] sm:$0xf]
      %v1240 = vld [vmem:[%s1237 + $0x8] sm:$0xf]
      %v1241 = vld [vmem:[%s1237 + $0xc] sm:$0xf]
      %v1242 = vld [vmem:[%s1237 + $0x10] sm:$0xf]
      %v1243 = vld [vmem:[%s1237 + $0x14] sm:$0xf]
      %v1244 = vld [vmem:[%s1237 + $0x18] sm:$0xf]
      %v1245 = vld [vmem:[%s1237 + $0x1c] sm:$0xf]
      %v1246 = vld [vmem:[%s1237 + $0x20] sm:$0xf]
      %v1247 = vld [vmem:[%s1237 + $0x24] sm:$0xf]
      %v1248 = vld [vmem:[%s1237 + $0x28] sm:$0xf]
      %v1249 = vld [vmem:[%s1237 + $0x2c] sm:$0xf]
      %v1250 = vld [vmem:[%s1237 + $0x30] sm:$0xf]
      %v1251 = vld [vmem:[%s1237 + $0x34] sm:$0xf]
      %v1252 = vld [vmem:[%s1237 + $0x38] sm:$0xf]
      %v1253 = vld [vmem:[%s1237 + $0x3c] sm:$0xf]
      %v1254 = vld [vmem:[#allocation3 + $0x8] sm:$0xff]
      %v1255 = vld [vmem:[#allocation3 + $0x10] sm:$0xff]
      %v1256 = vpack.c.bf16 %v1255, %v1254
      %s1257 = scalar_lea.vmem %s1, 640
      %v1258 = vld [vmem:[%s1257] sm:$0xf]
      %v1259 = vld [vmem:[%s1257 + $0x4] sm:$0xf]
      %v1260 = vld [vmem:[%s1257 + $0x8] sm:$0xf]
      %v1261 = vld [vmem:[%s1257 + $0xc] sm:$0xf]
      %v1262 = vld [vmem:[%s1257 + $0x10] sm:$0xf]
      %v1263 = vld [vmem:[%s1257 + $0x14] sm:$0xf]
      %v1264 = vld [vmem:[%s1257 + $0x18] sm:$0xf]
      %v1265 = vld [vmem:[%s1257 + $0x1c] sm:$0xf]
      %v1266 = vld [vmem:[%s1257 + $0x20] sm:$0xf]
      %v1267 = vld [vmem:[%s1257 + $0x24] sm:$0xf]
      %v1268 = vld [vmem:[%s1257 + $0x28] sm:$0xf]
      %v1269 = vld [vmem:[%s1257 + $0x2c] sm:$0xf]
      %v1270 = vld [vmem:[%s1257 + $0x30] sm:$0xf]
      %v1271 = vld [vmem:[%s1257 + $0x34] sm:$0xf]
      %v1272 = vld [vmem:[%s1257 + $0x38] sm:$0xf]
      %v1273 = vld [vmem:[%s1257 + $0x3c] sm:$0xf]
      %v1290 = vunpack.c.l.b16 %v1258
      %v1291 = vunpack.c.l.b16 %v1259
      %v1292 = vunpack.c.l.b16 %v1260
      %v1293 = vunpack.c.l.b16 %v1261
      %v1294 = vunpack.c.l.b16 %v1262
      %v1295 = vunpack.c.l.b16 %v1263
      %v1296 = vunpack.c.l.b16 %v1264
      %v1297 = vunpack.c.l.b16 %v1265
      %v1298 = vunpack.c.l.b16 %v1266
      %v1299 = vunpack.c.l.b16 %v1267
      %v1300 = vunpack.c.l.b16 %v1268
      %v1301 = vunpack.c.l.b16 %v1269
      %v1302 = vunpack.c.l.b16 %v1270
      %v1303 = vunpack.c.l.b16 %v1271
      %v1304 = vunpack.c.l.b16 %v1272
      %v1305 = vunpack.c.l.b16 %v1273
      %v1306 = vpack.c.b16 %v1291, %v1290
      %v1307 = vpack.c.b16 %v1293, %v1292
      %v1308 = vpack.c.b16 %v1295, %v1294
      %v1309 = vpack.c.b16 %v1297, %v1296
      %v1310 = vpack.c.b16 %v1299, %v1298
      %v1311 = vpack.c.b16 %v1301, %v1300
      %v1312 = vpack.c.b16 %v1303, %v1302
      %v1313 = vpack.c.b16 %v1305, %v1304
      %1322 = vmatprep.subr.bf16.mxu0 0
      %1323 = vmatpush1.bf16.msra.mxu0 %v1306
      %1324 = vmatprep.subr.bf16.mxu0 0
      %1325 = vmatpush1.bf16.msra.mxu0 %v1307
      %1326 = vmatprep.subr.bf16.mxu0 0
      %1327 = vmatpush1.bf16.msra.mxu0 %v1308
      %1328 = vmatprep.subr.bf16.mxu0 0
      %1329 = vmatpush1.bf16.msra.mxu0 %v1309
      %1330 = vmatprep.subr.bf16.mxu0 0
      %1331 = vmatpush1.bf16.msra.mxu0 %v1310
      %1332 = vmatprep.subr.bf16.mxu0 0
      %1333 = vmatpush1.bf16.msra.mxu0 %v1311
      %1334 = vmatprep.subr.bf16.mxu0 0
      %1335 = vmatpush1.bf16.msra.mxu0 %v1312
      %1336 = vmatprep.subr.bf16.mxu0 0
      %1337 = vmatpush1.bf16.msra.mxu0 %v1313
      %1338 = vmatprep.subr.bf16.mxu0 0
      %1339 = vmatpush1.bf16.msra.mxu0 0
      %1340 = vmatprep.subr.bf16.mxu0 0
      %1341 = vmatpush1.bf16.msra.mxu0 0
      %1342 = vmatprep.subr.bf16.mxu0 0
      %1343 = vmatpush1.bf16.msra.mxu0 0
      %1344 = vmatprep.subr.bf16.mxu0 0
      %1345 = vmatpush1.bf16.msra.mxu0 0
      %1346 = vmatprep.subr.bf16.mxu0 0
      %1347 = vmatpush1.bf16.msra.mxu0 0
      %1348 = vmatprep.subr.bf16.mxu0 0
      %1349 = vmatpush1.bf16.msra.mxu0 0
      %1350 = vmatprep.subr.bf16.mxu0 0
      %1351 = vmatpush1.bf16.msra.mxu0 0
      %1352 = vmatprep.subr.bf16.mxu0 0
      %1353 = vmatpush1.bf16.msra.mxu0 0
      %1354 = vmatprep.mubr.bf16.mxu0 0
      %1355 = vmatmul.mubr.bf16.gmra.mrb[0].mxu0 %v1256
      %v1356 = vpop.f32.mrb[0].mxu0
      %v1357 = vadd.f32 0.0, %v1356
      %v1358 = vpop.f32.mrb[0].mxu0
      %v1359 = vpop.f32.mrb[0].mxu0
      %v1360 = vadd.f32 0.0, %v1359
      %v1361 = vpop.f32.mrb[0].mxu0
      %1362 = vdwg.mxu0
      %v1379 = vunpack.c.l.b16 %v1238
      %v1380 = vunpack.c.l.b16 %v1239
      %v1381 = vunpack.c.l.b16 %v1240
      %v1382 = vunpack.c.l.b16 %v1241
      %v1383 = vunpack.c.l.b16 %v1242
      %v1384 = vunpack.c.l.b16 %v1243
      %v1385 = vunpack.c.l.b16 %v1244
      %v1386 = vunpack.c.l.b16 %v1245
      %v1387 = vunpack.c.l.b16 %v1246
      %v1388 = vunpack.c.l.b16 %v1247
      %v1389 = vunpack.c.l.b16 %v1248
      %v1390 = vunpack.c.l.b16 %v1249
      %v1391 = vunpack.c.l.b16 %v1250
      %v1392 = vunpack.c.l.b16 %v1251
      %v1393 = vunpack.c.l.b16 %v1252
      %v1394 = vunpack.c.l.b16 %v1253
      %v1395 = vpack.c.b16 %v1380, %v1379
      %v1396 = vpack.c.b16 %v1382, %v1381
      %v1397 = vpack.c.b16 %v1384, %v1383
      %v1398 = vpack.c.b16 %v1386, %v1385
      %v1399 = vpack.c.b16 %v1388, %v1387
      %v1400 = vpack.c.b16 %v1390, %v1389
      %v1401 = vpack.c.b16 %v1392, %v1391
      %v1402 = vpack.c.b16 %v1394, %v1393
      %1411 = vmatprep.subr.bf16.mxu0 0
      %1412 = vmatpush1.bf16.msra.mxu0 %v1395
      %1413 = vmatprep.subr.bf16.mxu0 0
      %1414 = vmatpush1.bf16.msra.mxu0 %v1396
      %1415 = vmatprep.subr.bf16.mxu0 0
      %1416 = vmatpush1.bf16.msra.mxu0 %v1397
      %1417 = vmatprep.subr.bf16.mxu0 0
      %1418 = vmatpush1.bf16.msra.mxu0 %v1398
      %1419 = vmatprep.subr.bf16.mxu0 0
      %1420 = vmatpush1.bf16.msra.mxu0 %v1399
      %1421 = vmatprep.subr.bf16.mxu0 0
      %1422 = vmatpush1.bf16.msra.mxu0 %v1400
      %1423 = vmatprep.subr.bf16.mxu0 0
      %1424 = vmatpush1.bf16.msra.mxu0 %v1401
      %1425 = vmatprep.subr.bf16.mxu0 0
      %1426 = vmatpush1.bf16.msra.mxu0 %v1402
      %1427 = vmatprep.subr.bf16.mxu0 0
      %1428 = vmatpush1.bf16.msra.mxu0 0
      %1429 = vmatprep.subr.bf16.mxu0 0
      %1430 = vmatpush1.bf16.msra.mxu0 0
      %1431 = vmatprep.subr.bf16.mxu0 0
      %1432 = vmatpush1.bf16.msra.mxu0 0
      %1433 = vmatprep.subr.bf16.mxu0 0
      %1434 = vmatpush1.bf16.msra.mxu0 0
      %1435 = vmatprep.subr.bf16.mxu0 0
      %1436 = vmatpush1.bf16.msra.mxu0 0
      %1437 = vmatprep.subr.bf16.mxu0 0
      %1438 = vmatpush1.bf16.msra.mxu0 0
      %1439 = vmatprep.subr.bf16.mxu0 0
      %1440 = vmatpush1.bf16.msra.mxu0 0
      %1441 = vmatprep.subr.bf16.mxu0 0
      %1442 = vmatpush1.bf16.msra.mxu0 0
      %1443 = vmatprep.mubr.bf16.mxu0 0
      %1444 = vmatmul.mubr.bf16.gmra.mrb[0].mxu0 %v1236
      %v1445 = vpop.f32.mrb[0].mxu0
      %v1446 = vadd.f32 %v1357, %v1445
      %v1447 = vpop.f32.mrb[0].mxu0
      %v1448 = vpop.f32.mrb[0].mxu0
      %v1449 = vadd.f32 %v1360, %v1448
      %v1450 = vpop.f32.mrb[0].mxu0
      %1451 = vdwg.mxu0
      %v1452 = vld [vmem:[#allocation3 + $0xc] sm:$0xff]
      %v1453 = vld [vmem:[#allocation3 + $0x14] sm:$0xff]
      %v1454 = vpack.c.bf16 %v1453, %v1452
      %s1455 = scalar_lea.vmem %s1, 704
      %v1456 = vld [vmem:[%s1455] sm:$0xf]
      %v1457 = vld [vmem:[%s1455 + $0x4] sm:$0xf]
      %v1458 = vld [vmem:[%s1455 + $0x8] sm:$0xf]
      %v1459 = vld [vmem:[%s1455 + $0xc] sm:$0xf]
      %v1460 = vld [vmem:[%s1455 + $0x10] sm:$0xf]
      %v1461 = vld [vmem:[%s1455 + $0x14] sm:$0xf]
      %v1462 = vld [vmem:[%s1455 + $0x18] sm:$0xf]
      %v1463 = vld [vmem:[%s1455 + $0x1c] sm:$0xf]
      %v1464 = vld [vmem:[%s1455 + $0x20] sm:$0xf]
      %v1465 = vld [vmem:[%s1455 + $0x24] sm:$0xf]
      %v1466 = vld [vmem:[%s1455 + $0x28] sm:$0xf]
      %v1467 = vld [vmem:[%s1455 + $0x2c] sm:$0xf]
      %v1468 = vld [vmem:[%s1455 + $0x30] sm:$0xf]
      %v1469 = vld [vmem:[%s1455 + $0x34] sm:$0xf]
      %v1470 = vld [vmem:[%s1455 + $0x38] sm:$0xf]
      %v1471 = vld [vmem:[%s1455 + $0x3c] sm:$0xf]
      %v1488 = vunpack.c.l.b16 %v1456
      %v1489 = vunpack.c.l.b16 %v1457
      %v1490 = vunpack.c.l.b16 %v1458
      %v1491 = vunpack.c.l.b16 %v1459
      %v1492 = vunpack.c.l.b16 %v1460
      %v1493 = vunpack.c.l.b16 %v1461
      %v1494 = vunpack.c.l.b16 %v1462
      %v1495 = vunpack.c.l.b16 %v1463
      %v1496 = vunpack.c.l.b16 %v1464
      %v1497 = vunpack.c.l.b16 %v1465
      %v1498 = vunpack.c.l.b16 %v1466
      %v1499 = vunpack.c.l.b16 %v1467
      %v1500 = vunpack.c.l.b16 %v1468
      %v1501 = vunpack.c.l.b16 %v1469
      %v1502 = vunpack.c.l.b16 %v1470
      %v1503 = vunpack.c.l.b16 %v1471
      %v1504 = vpack.c.b16 %v1489, %v1488
      %v1505 = vpack.c.b16 %v1491, %v1490
      %v1506 = vpack.c.b16 %v1493, %v1492
      %v1507 = vpack.c.b16 %v1495, %v1494
      %v1508 = vpack.c.b16 %v1497, %v1496
      %v1509 = vpack.c.b16 %v1499, %v1498
      %v1510 = vpack.c.b16 %v1501, %v1500
      %v1511 = vpack.c.b16 %v1503, %v1502
      %1520 = vmatprep.subr.bf16.mxu0 0
      %1521 = vmatpush1.bf16.msra.mxu0 %v1504
      %1522 = vmatprep.subr.bf16.mxu0 0
      %1523 = vmatpush1.bf16.msra.mxu0 %v1505
      %1524 = vmatprep.subr.bf16.mxu0 0
      %1525 = vmatpush1.bf16.msra.mxu0 %v1506
      %1526 = vmatprep.subr.bf16.mxu0 0
      %1527 = vmatpush1.bf16.msra.mxu0 %v1507
      %1528 = vmatprep.subr.bf16.mxu0 0
      %1529 = vmatpush1.bf16.msra.mxu0 %v1508
      %1530 = vmatprep.subr.bf16.mxu0 0
      %1531 = vmatpush1.bf16.msra.mxu0 %v1509
      %1532 = vmatprep.subr.bf16.mxu0 0
      %1533 = vmatpush1.bf16.msra.mxu0 %v1510
      %1534 = vmatprep.subr.bf16.mxu0 0
      %1535 = vmatpush1.bf16.msra.mxu0 %v1511
      %1536 = vmatprep.subr.bf16.mxu0 0
      %1537 = vmatpush1.bf16.msra.mxu0 0
      %1538 = vmatprep.subr.bf16.mxu0 0
      %1539 = vmatpush1.bf16.msra.mxu0 0
      %1540 = vmatprep.subr.bf16.mxu0 0
      %1541 = vmatpush1.bf16.msra.mxu0 0
      %1542 = vmatprep.subr.bf16.mxu0 0
      %1543 = vmatpush1.bf16.msra.mxu0 0
      %1544 = vmatprep.subr.bf16.mxu0 0
      %1545 = vmatpush1.bf16.msra.mxu0 0
      %1546 = vmatprep.subr.bf16.mxu0 0
      %1547 = vmatpush1.bf16.msra.mxu0 0
      %1548 = vmatprep.subr.bf16.mxu0 0
      %1549 = vmatpush1.bf16.msra.mxu0 0
      %1550 = vmatprep.subr.bf16.mxu0 0
      %1551 = vmatpush1.bf16.msra.mxu0 0
      %1552 = vmatprep.mubr.bf16.mxu0 0
      %1553 = vmatmul.mubr.bf16.gmra.mrb[0].mxu0 %v1454
      %v1554 = vpop.f32.mrb[0].mxu0
      %v1555 = vadd.f32 0.0, %v1554
      %v1556 = vpop.f32.mrb[0].mxu0
      %v1557 = vpop.f32.mrb[0].mxu0
      %v1558 = vadd.f32 0.0, %v1557
      %v1559 = vpop.f32.mrb[0].mxu0
      %1560 = vdwg.mxu0
      %v1561 = vadd.f32 %v1446, %v1555
      %v1562 = vadd.f32 %v1449, %v1558
      %v1564 = vlaneseq
      %v1565 = vshrl.u32 %v1564, 7
      %v1566 = vsub.s32 0, %v1565
      %v1567 = vrot.slane %v1233, %v1566
      %v1569 = vadd.f32 %v1561, %v1567
      %v1570 = vadd.f32 %v1562, %v1567
      %v1571 = vmax.f32 %v1569, 0.0
      %v1572 = vmax.f32 %v1570, 0.0
      %1573 = vst [vmem:[#allocation3 + $0x8] sm:$0xff] %v887
      %1574 = vst [vmem:[#allocation3 + $0x10] sm:$0xff] %v888
      %v1575 = vld [vmem:[#allocation3 + $0x7] sm:$0xff]
      %v1576 = vld [vmem:[#allocation3 + $0xf] sm:$0xff]
      %v1577 = vpack.c.bf16 %v1576, %v1575
      %v1578 = vld [vmem:[%s2] sm:$0xf]
      %v1579 = vld [vmem:[%s2 + $0x4] sm:$0xf]
      %v1580 = vld [vmem:[%s2 + $0x8] sm:$0xf]
      %v1581 = vld [vmem:[%s2 + $0xc] sm:$0xf]
      %v1582 = vld [vmem:[%s2 + $0x10] sm:$0xf]
      %v1583 = vld [vmem:[%s2 + $0x14] sm:$0xf]
      %v1584 = vld [vmem:[%s2 + $0x18] sm:$0xf]
      %v1585 = vld [vmem:[%s2 + $0x1c] sm:$0xf]
      %v1586 = vld [vmem:[%s2 + $0x20] sm:$0xf]
      %v1587 = vld [vmem:[%s2 + $0x24] sm:$0xf]
      %v1588 = vld [vmem:[%s2 + $0x28] sm:$0xf]
      %v1589 = vld [vmem:[%s2 + $0x2c] sm:$0xf]
      %v1590 = vld [vmem:[%s2 + $0x30] sm:$0xf]
      %v1591 = vld [vmem:[%s2 + $0x34] sm:$0xf]
      %v1592 = vld [vmem:[%s2 + $0x38] sm:$0xf]
      %v1593 = vld [vmem:[%s2 + $0x3c] sm:$0xf]
      %v1594 = vld [vmem:[#allocation3 + $0x8] sm:$0xff]
      %v1595 = vld [vmem:[#allocation3 + $0x10] sm:$0xff]
      %v1596 = vpack.c.bf16 %v1595, %v1594
      %s1597 = scalar_lea.vmem %s2, 64
      %v1598 = vld [vmem:[%s1597] sm:$0xf]
      %v1599 = vld [vmem:[%s1597 + $0x4] sm:$0xf]
      %v1600 = vld [vmem:[%s1597 + $0x8] sm:$0xf]
      %v1601 = vld [vmem:[%s1597 + $0xc] sm:$0xf]
      %v1602 = vld [vmem:[%s1597 + $0x10] sm:$0xf]
      %v1603 = vld [vmem:[%s1597 + $0x14] sm:$0xf]
      %v1604 = vld [vmem:[%s1597 + $0x18] sm:$0xf]
      %v1605 = vld [vmem:[%s1597 + $0x1c] sm:$0xf]
      %v1606 = vld [vmem:[%s1597 + $0x20] sm:$0xf]
      %v1607 = vld [vmem:[%s1597 + $0x24] sm:$0xf]
      %v1608 = vld [vmem:[%s1597 + $0x28] sm:$0xf]
      %v1609 = vld [vmem:[%s1597 + $0x2c] sm:$0xf]
      %v1610 = vld [vmem:[%s1597 + $0x30] sm:$0xf]
      %v1611 = vld [vmem:[%s1597 + $0x34] sm:$0xf]
      %v1612 = vld [vmem:[%s1597 + $0x38] sm:$0xf]
      %v1613 = vld [vmem:[%s1597 + $0x3c] sm:$0xf]
      %v1630 = vunpack.c.l.b16 %v1598
      %v1631 = vunpack.c.l.b16 %v1599
      %v1632 = vunpack.c.l.b16 %v1600
      %v1633 = vunpack.c.l.b16 %v1601
      %v1634 = vunpack.c.l.b16 %v1602
      %v1635 = vunpack.c.l.b16 %v1603
      %v1636 = vunpack.c.l.b16 %v1604
      %v1637 = vunpack.c.l.b16 %v1605
      %v1638 = vunpack.c.l.b16 %v1606
      %v1639 = vunpack.c.l.b16 %v1607
      %v1640 = vunpack.c.l.b16 %v1608
      %v1641 = vunpack.c.l.b16 %v1609
      %v1642 = vunpack.c.l.b16 %v1610
      %v1643 = vunpack.c.l.b16 %v1611
      %v1644 = vunpack.c.l.b16 %v1612
      %v1645 = vunpack.c.l.b16 %v1613
      %v1646 = vpack.c.b16 %v1631, %v1630
      %v1647 = vpack.c.b16 %v1633, %v1632
      %v1648 = vpack.c.b16 %v1635, %v1634
      %v1649 = vpack.c.b16 %v1637, %v1636
      %v1650 = vpack.c.b16 %v1639, %v1638
      %v1651 = vpack.c.b16 %v1641, %v1640
      %v1652 = vpack.c.b16 %v1643, %v1642
      %v1653 = vpack.c.b16 %v1645, %v1644
      %1662 = vmatprep.subr.bf16.mxu0 0
      %1663 = vmatpush1.bf16.msra.mxu0 %v1646
      %1664 = vmatprep.subr.bf16.mxu0 0
      %1665 = vmatpush1.bf16.msra.mxu0 %v1647
      %1666 = vmatprep.subr.bf16.mxu0 0
      %1667 = vmatpush1.bf16.msra.mxu0 %v1648
      %1668 = vmatprep.subr.bf16.mxu0 0
      %1669 = vmatpush1.bf16.msra.mxu0 %v1649
      %1670 = vmatprep.subr.bf16.mxu0 0
      %1671 = vmatpush1.bf16.msra.mxu0 %v1650
      %1672 = vmatprep.subr.bf16.mxu0 0
      %1673 = vmatpush1.bf16.msra.mxu0 %v1651
      %1674 = vmatprep.subr.bf16.mxu0 0
      %1675 = vmatpush1.bf16.msra.mxu0 %v1652
      %1676 = vmatprep.subr.bf16.mxu0 0
      %1677 = vmatpush1.bf16.msra.mxu0 %v1653
      %1678 = vmatprep.subr.bf16.mxu0 0
      %1679 = vmatpush1.bf16.msra.mxu0 0
      %1680 = vmatprep.subr.bf16.mxu0 0
      %1681 = vmatpush1.bf16.msra.mxu0 0
      %1682 = vmatprep.subr.bf16.mxu0 0
      %1683 = vmatpush1.bf16.msra.mxu0 0
      %1684 = vmatprep.subr.bf16.mxu0 0
      %1685 = vmatpush1.bf16.msra.mxu0 0
      %1686 = vmatprep.subr.bf16.mxu0 0
      %1687 = vmatpush1.bf16.msra.mxu0 0
      %1688 = vmatprep.subr.bf16.mxu0 0
      %1689 = vmatpush1.bf16.msra.mxu0 0
      %1690 = vmatprep.subr.bf16.mxu0 0
      %1691 = vmatpush1.bf16.msra.mxu0 0
      %1692 = vmatprep.subr.bf16.mxu0 0
      %1693 = vmatpush1.bf16.msra.mxu0 0
      %1694 = vmatprep.mubr.bf16.mxu0 0
      %1695 = vmatmul.mubr.bf16.gmra.mrb[0].mxu0 %v1596
      %v1696 = vpop.f32.mrb[0].mxu0
      %v1697 = vadd.f32 0.0, %v1696
      %v1698 = vpop.f32.mrb[0].mxu0
      %v1699 = vpop.f32.mrb[0].mxu0
      %v1700 = vadd.f32 0.0, %v1699
      %v1701 = vpop.f32.mrb[0].mxu0
      %1702 = vdwg.mxu0
      %v1719 = vunpack.c.l.b16 %v1578
      %v1720 = vunpack.c.l.b16 %v1579
      %v1721 = vunpack.c.l.b16 %v1580
      %v1722 = vunpack.c.l.b16 %v1581
      %v1723 = vunpack.c.l.b16 %v1582
      %v1724 = vunpack.c.l.b16 %v1583
      %v1725 = vunpack.c.l.b16 %v1584
      %v1726 = vunpack.c.l.b16 %v1585
      %v1727 = vunpack.c.l.b16 %v1586
      %v1728 = vunpack.c.l.b16 %v1587
      %v1729 = vunpack.c.l.b16 %v1588
      %v1730 = vunpack.c.l.b16 %v1589
      %v1731 = vunpack.c.l.b16 %v1590
      %v1732 = vunpack.c.l.b16 %v1591
      %v1733 = vunpack.c.l.b16 %v1592
      %v1734 = vunpack.c.l.b16 %v1593
      %v1735 = vpack.c.b16 %v1720, %v1719
      %v1736 = vpack.c.b16 %v1722, %v1721
      %v1737 = vpack.c.b16 %v1724, %v1723
      %v1738 = vpack.c.b16 %v1726, %v1725
      %v1739 = vpack.c.b16 %v1728, %v1727
      %v1740 = vpack.c.b16 %v1730, %v1729
      %v1741 = vpack.c.b16 %v1732, %v1731
      %v1742 = vpack.c.b16 %v1734, %v1733
      %1751 = vmatprep.subr.bf16.mxu0 0
      %1752 = vmatpush1.bf16.msra.mxu0 %v1735
      %1753 = vmatprep.subr.bf16.mxu0 0
      %1754 = vmatpush1.bf16.msra.mxu0 %v1736
      %1755 = vmatprep.subr.bf16.mxu0 0
      %1756 = vmatpush1.bf16.msra.mxu0 %v1737
      %1757 = vmatprep.subr.bf16.mxu0 0
      %1758 = vmatpush1.bf16.msra.mxu0 %v1738
      %1759 = vmatprep.subr.bf16.mxu0 0
      %1760 = vmatpush1.bf16.msra.mxu0 %v1739
      %1761 = vmatprep.subr.bf16.mxu0 0
      %1762 = vmatpush1.bf16.msra.mxu0 %v1740
      %1763 = vmatprep.subr.bf16.mxu0 0
      %1764 = vmatpush1.bf16.msra.mxu0 %v1741
      %1765 = vmatprep.subr.bf16.mxu0 0
      %1766 = vmatpush1.bf16.msra.mxu0 %v1742
      %1767 = vmatprep.subr.bf16.mxu0 0
      %1768 = vmatpush1.bf16.msra.mxu0 0
      %1769 = vmatprep.subr.bf16.mxu0 0
      %1770 = vmatpush1.bf16.msra.mxu0 0
      %1771 = vmatprep.subr.bf16.mxu0 0
      %1772 = vmatpush1.bf16.msra.mxu0 0
      %1773 = vmatprep.subr.bf16.mxu0 0
      %1774 = vmatpush1.bf16.msra.mxu0 0
      %1775 = vmatprep.subr.bf16.mxu0 0
      %1776 = vmatpush1.bf16.msra.mxu0 0
      %1777 = vmatprep.subr.bf16.mxu0 0
      %1778 = vmatpush1.bf16.msra.mxu0 0
      %1779 = vmatprep.subr.bf16.mxu0 0
      %1780 = vmatpush1.bf16.msra.mxu0 0
      %1781 = vmatprep.subr.bf16.mxu0 0
      %1782 = vmatpush1.bf16.msra.mxu0 0
      %1783 = vmatprep.mubr.bf16.mxu0 0
      %1784 = vmatmul.mubr.bf16.gmra.mrb[0].mxu0 %v1577
      %v1785 = vpop.f32.mrb[0].mxu0
      %v1786 = vadd.f32 %v1697, %v1785
      %v1787 = vpop.f32.mrb[0].mxu0
      %v1788 = vpop.f32.mrb[0].mxu0
      %v1789 = vadd.f32 %v1700, %v1788
      %v1790 = vpop.f32.mrb[0].mxu0
      %1791 = vdwg.mxu0
      %v1792 = vld [vmem:[#allocation3 + $0x9] sm:$0xff]
      %v1793 = vld [vmem:[#allocation3 + $0x11] sm:$0xff]
      %v1794 = vpack.c.bf16 %v1793, %v1792
      %s1795 = scalar_lea.vmem %s2, 128
      %v1796 = vld [vmem:[%s1795] sm:$0xf]
      %v1797 = vld [vmem:[%s1795 + $0x4] sm:$0xf]
      %v1798 = vld [vmem:[%s1795 + $0x8] sm:$0xf]
      %v1799 = vld [vmem:[%s1795 + $0xc] sm:$0xf]
      %v1800 = vld [vmem:[%s1795 + $0x10] sm:$0xf]
      %v1801 = vld [vmem:[%s1795 + $0x14] sm:$0xf]
      %v1802 = vld [vmem:[%s1795 + $0x18] sm:$0xf]
      %v1803 = vld [vmem:[%s1795 + $0x1c] sm:$0xf]
      %v1804 = vld [vmem:[%s1795 + $0x20] sm:$0xf]
      %v1805 = vld [vmem:[%s1795 + $0x24] sm:$0xf]
      %v1806 = vld [vmem:[%s1795 + $0x28] sm:$0xf]
      %v1807 = vld [vmem:[%s1795 + $0x2c] sm:$0xf]
      %v1808 = vld [vmem:[%s1795 + $0x30] sm:$0xf]
      %v1809 = vld [vmem:[%s1795 + $0x34] sm:$0xf]
      %v1810 = vld [vmem:[%s1795 + $0x38] sm:$0xf]
      %v1811 = vld [vmem:[%s1795 + $0x3c] sm:$0xf]
      %v1828 = vunpack.c.l.b16 %v1796
      %v1829 = vunpack.c.l.b16 %v1797
      %v1830 = vunpack.c.l.b16 %v1798
      %v1831 = vunpack.c.l.b16 %v1799
      %v1832 = vunpack.c.l.b16 %v1800
      %v1833 = vunpack.c.l.b16 %v1801
      %v1834 = vunpack.c.l.b16 %v1802
      %v1835 = vunpack.c.l.b16 %v1803
      %v1836 = vunpack.c.l.b16 %v1804
      %v1837 = vunpack.c.l.b16 %v1805
      %v1838 = vunpack.c.l.b16 %v1806
      %v1839 = vunpack.c.l.b16 %v1807
      %v1840 = vunpack.c.l.b16 %v1808
      %v1841 = vunpack.c.l.b16 %v1809
      %v1842 = vunpack.c.l.b16 %v1810
      %v1843 = vunpack.c.l.b16 %v1811
      %v1844 = vpack.c.b16 %v1829, %v1828
      %v1845 = vpack.c.b16 %v1831, %v1830
      %v1846 = vpack.c.b16 %v1833, %v1832
      %v1847 = vpack.c.b16 %v1835, %v1834
      %v1848 = vpack.c.b16 %v1837, %v1836
      %v1849 = vpack.c.b16 %v1839, %v1838
      %v1850 = vpack.c.b16 %v1841, %v1840
      %v1851 = vpack.c.b16 %v1843, %v1842
      %1860 = vmatprep.subr.bf16.mxu0 0
      %1861 = vmatpush1.bf16.msra.mxu0 %v1844
      %1862 = vmatprep.subr.bf16.mxu0 0
      %1863 = vmatpush1.bf16.msra.mxu0 %v1845
      %1864 = vmatprep.subr.bf16.mxu0 0
      %1865 = vmatpush1.bf16.msra.mxu0 %v1846
      %1866 = vmatprep.subr.bf16.mxu0 0
      %1867 = vmatpush1.bf16.msra.mxu0 %v1847
      %1868 = vmatprep.subr.bf16.mxu0 0
      %1869 = vmatpush1.bf16.msra.mxu0 %v1848
      %1870 = vmatprep.subr.bf16.mxu0 0
      %1871 = vmatpush1.bf16.msra.mxu0 %v1849
      %1872 = vmatprep.subr.bf16.mxu0 0
      %1873 = vmatpush1.bf16.msra.mxu0 %v1850
      %1874 = vmatprep.subr.bf16.mxu0 0
      %1875 = vmatpush1.bf16.msra.mxu0 %v1851
      %1876 = vmatprep.subr.bf16.mxu0 0
      %1877 = vmatpush1.bf16.msra.mxu0 0
      %1878 = vmatprep.subr.bf16.mxu0 0
      %1879 = vmatpush1.bf16.msra.mxu0 0
      %1880 = vmatprep.subr.bf16.mxu0 0
      %1881 = vmatpush1.bf16.msra.mxu0 0
      %1882 = vmatprep.subr.bf16.mxu0 0
      %1883 = vmatpush1.bf16.msra.mxu0 0
      %1884 = vmatprep.subr.bf16.mxu0 0
      %1885 = vmatpush1.bf16.msra.mxu0 0
      %1886 = vmatprep.subr.bf16.mxu0 0
      %1887 = vmatpush1.bf16.msra.mxu0 0
      %1888 = vmatprep.subr.bf16.mxu0 0
      %1889 = vmatpush1.bf16.msra.mxu0 0
      %1890 = vmatprep.subr.bf16.mxu0 0
      %1891 = vmatpush1.bf16.msra.mxu0 0
      %1892 = vmatprep.mubr.bf16.mxu0 0
      %1893 = vmatmul.mubr.bf16.gmra.mrb[0].mxu0 %v1794
      %v1894 = vpop.f32.mrb[0].mxu0
      %v1895 = vadd.f32 0.0, %v1894
      %v1896 = vpop.f32.mrb[0].mxu0
      %v1897 = vpop.f32.mrb[0].mxu0
      %v1898 = vadd.f32 0.0, %v1897
      %v1899 = vpop.f32.mrb[0].mxu0
      %1900 = vdwg.mxu0
      %v1901 = vadd.f32 %v1786, %v1895
      %v1902 = vadd.f32 %v1789, %v1898
      %1903 = vst [vmem:[#allocation3 + $0x8] sm:$0xff] %v1571
      %1904 = vst [vmem:[#allocation3 + $0x10] sm:$0xff] %v1572
      %v1905 = vld [vmem:[#allocation3 + $0x7] sm:$0xff]
      %v1906 = vld [vmem:[#allocation3 + $0xf] sm:$0xff]
      %v1907 = vpack.c.bf16 %v1906, %v1905
      %s1908 = scalar_lea.vmem %s2, 192
      %v1909 = vld [vmem:[%s1908] sm:$0xf]
      %v1910 = vld [vmem:[%s1908 + $0x4] sm:$0xf]
      %v1911 = vld [vmem:[%s1908 + $0x8] sm:$0xf]
      %v1912 = vld [vmem:[%s1908 + $0xc] sm:$0xf]
      %v1913 = vld [vmem:[%s1908 + $0x10] sm:$0xf]
      %v1914 = vld [vmem:[%s1908 + $0x14] sm:$0xf]
      %v1915 = vld [vmem:[%s1908 + $0x18] sm:$0xf]
      %v1916 = vld [vmem:[%s1908 + $0x1c] sm:$0xf]
      %v1917 = vld [vmem:[%s1908 + $0x20] sm:$0xf]
      %v1918 = vld [vmem:[%s1908 + $0x24] sm:$0xf]
      %v1919 = vld [vmem:[%s1908 + $0x28] sm:$0xf]
      %v1920 = vld [vmem:[%s1908 + $0x2c] sm:$0xf]
      %v1921 = vld [vmem:[%s1908 + $0x30] sm:$0xf]
      %v1922 = vld [vmem:[%s1908 + $0x34] sm:$0xf]
      %v1923 = vld [vmem:[%s1908 + $0x38] sm:$0xf]
      %v1924 = vld [vmem:[%s1908 + $0x3c] sm:$0xf]
      %v1941 = vunpack.c.l.b16 %v1909
      %v1942 = vunpack.c.l.b16 %v1910
      %v1943 = vunpack.c.l.b16 %v1911
      %v1944 = vunpack.c.l.b16 %v1912
      %v1945 = vunpack.c.l.b16 %v1913
      %v1946 = vunpack.c.l.b16 %v1914
      %v1947 = vunpack.c.l.b16 %v1915
      %v1948 = vunpack.c.l.b16 %v1916
      %v1949 = vunpack.c.l.b16 %v1917
      %v1950 = vunpack.c.l.b16 %v1918
      %v1951 = vunpack.c.l.b16 %v1919
      %v1952 = vunpack.c.l.b16 %v1920
      %v1953 = vunpack.c.l.b16 %v1921
      %v1954 = vunpack.c.l.b16 %v1922
      %v1955 = vunpack.c.l.b16 %v1923
      %v1956 = vunpack.c.l.b16 %v1924
      %v1957 = vpack.c.b16 %v1942, %v1941
      %v1958 = vpack.c.b16 %v1944, %v1943
      %v1959 = vpack.c.b16 %v1946, %v1945
      %v1960 = vpack.c.b16 %v1948, %v1947
      %v1961 = vpack.c.b16 %v1950, %v1949
      %v1962 = vpack.c.b16 %v1952, %v1951
      %v1963 = vpack.c.b16 %v1954, %v1953
      %v1964 = vpack.c.b16 %v1956, %v1955
      %1973 = vmatprep.subr.bf16.mxu0 0
      %1974 = vmatpush1.bf16.msra.mxu0 %v1957
      %1975 = vmatprep.subr.bf16.mxu0 0
      %1976 = vmatpush1.bf16.msra.mxu0 %v1958
      %1977 = vmatprep.subr.bf16.mxu0 0
      %1978 = vmatpush1.bf16.msra.mxu0 %v1959
      %1979 = vmatprep.subr.bf16.mxu0 0
      %1980 = vmatpush1.bf16.msra.mxu0 %v1960
      %1981 = vmatprep.subr.bf16.mxu0 0
      %1982 = vmatpush1.bf16.msra.mxu0 %v1961
      %1983 = vmatprep.subr.bf16.mxu0 0
      %1984 = vmatpush1.bf16.msra.mxu0 %v1962
      %1985 = vmatprep.subr.bf16.mxu0 0
      %1986 = vmatpush1.bf16.msra.mxu0 %v1963
      %1987 = vmatprep.subr.bf16.mxu0 0
      %1988 = vmatpush1.bf16.msra.mxu0 %v1964
      %1989 = vmatprep.subr.bf16.mxu0 0
      %1990 = vmatpush1.bf16.msra.mxu0 0
      %1991 = vmatprep.subr.bf16.mxu0 0
      %1992 = vmatpush1.bf16.msra.mxu0 0
      %1993 = vmatprep.subr.bf16.mxu0 0
      %1994 = vmatpush1.bf16.msra.mxu0 0
      %1995 = vmatprep.subr.bf16.mxu0 0
      %1996 = vmatpush1.bf16.msra.mxu0 0
      %1997 = vmatprep.subr.bf16.mxu0 0
      %1998 = vmatpush1.bf16.msra.mxu0 0
      %1999 = vmatprep.subr.bf16.mxu0 0
      %2000 = vmatpush1.bf16.msra.mxu0 0
      %2001 = vmatprep.subr.bf16.mxu0 0
      %2002 = vmatpush1.bf16.msra.mxu0 0
      %2003 = vmatprep.subr.bf16.mxu0 0
      %2004 = vmatpush1.bf16.msra.mxu0 0
      %2005 = vmatprep.mubr.bf16.mxu0 0
      %2006 = vmatmul.mubr.bf16.gmra.mrb[0].mxu0 %v1907
      %v2007 = vpop.f32.mrb[0].mxu0
      %v2008 = vadd.f32 0.0, %v2007
      %v2009 = vpop.f32.mrb[0].mxu0
      %v2010 = vpop.f32.mrb[0].mxu0
      %v2011 = vadd.f32 0.0, %v2010
      %v2012 = vpop.f32.mrb[0].mxu0
      %2013 = vdwg.mxu0
      %v2014 = vadd.f32 %v1901, %v2008
      %v2015 = vadd.f32 %v1902, %v2011
      %v2016 = vld [vmem:[#allocation3 + $0x8] sm:$0xff]
      %v2017 = vld [vmem:[#allocation3 + $0x10] sm:$0xff]
      %v2018 = vpack.c.bf16 %v2017, %v2016
      %s2019 = scalar_lea.vmem %s2, 256
      %v2020 = vld [vmem:[%s2019] sm:$0xf]
      %v2021 = vld [vmem:[%s2019 + $0x4] sm:$0xf]
      %v2022 = vld [vmem:[%s2019 + $0x8] sm:$0xf]
      %v2023 = vld [vmem:[%s2019 + $0xc] sm:$0xf]
      %v2024 = vld [vmem:[%s2019 + $0x10] sm:$0xf]
      %v2025 = vld [vmem:[%s2019 + $0x14] sm:$0xf]
      %v2026 = vld [vmem:[%s2019 + $0x18] sm:$0xf]
      %v2027 = vld [vmem:[%s2019 + $0x1c] sm:$0xf]
      %v2028 = vld [vmem:[%s2019 + $0x20] sm:$0xf]
      %v2029 = vld [vmem:[%s2019 + $0x24] sm:$0xf]
      %v2030 = vld [vmem:[%s2019 + $0x28] sm:$0xf]
      %v2031 = vld [vmem:[%s2019 + $0x2c] sm:$0xf]
      %v2032 = vld [vmem:[%s2019 + $0x30] sm:$0xf]
      %v2033 = vld [vmem:[%s2019 + $0x34] sm:$0xf]
      %v2034 = vld [vmem:[%s2019 + $0x38] sm:$0xf]
      %v2035 = vld [vmem:[%s2019 + $0x3c] sm:$0xf]
      %v2052 = vunpack.c.l.b16 %v2020
      %v2053 = vunpack.c.l.b16 %v2021
      %v2054 = vunpack.c.l.b16 %v2022
      %v2055 = vunpack.c.l.b16 %v2023
      %v2056 = vunpack.c.l.b16 %v2024
      %v2057 = vunpack.c.l.b16 %v2025
      %v2058 = vunpack.c.l.b16 %v2026
      %v2059 = vunpack.c.l.b16 %v2027
      %v2060 = vunpack.c.l.b16 %v2028
      %v2061 = vunpack.c.l.b16 %v2029
      %v2062 = vunpack.c.l.b16 %v2030
      %v2063 = vunpack.c.l.b16 %v2031
      %v2064 = vunpack.c.l.b16 %v2032
      %v2065 = vunpack.c.l.b16 %v2033
      %v2066 = vunpack.c.l.b16 %v2034
      %v2067 = vunpack.c.l.b16 %v2035
      %v2068 = vpack.c.b16 %v2053, %v2052
      %v2069 = vpack.c.b16 %v2055, %v2054
      %v2070 = vpack.c.b16 %v2057, %v2056
      %v2071 = vpack.c.b16 %v2059, %v2058
      %v2072 = vpack.c.b16 %v2061, %v2060
      %v2073 = vpack.c.b16 %v2063, %v2062
      %v2074 = vpack.c.b16 %v2065, %v2064
      %v2075 = vpack.c.b16 %v2067, %v2066
      %2084 = vmatprep.subr.bf16.mxu0 0
      %2085 = vmatpush1.bf16.msra.mxu0 %v2068
      %2086 = vmatprep.subr.bf16.mxu0 0
      %2087 = vmatpush1.bf16.msra.mxu0 %v2069
      %2088 = vmatprep.subr.bf16.mxu0 0
      %2089 = vmatpush1.bf16.msra.mxu0 %v2070
      %2090 = vmatprep.subr.bf16.mxu0 0
      %2091 = vmatpush1.bf16.msra.mxu0 %v2071
      %2092 = vmatprep.subr.bf16.mxu0 0
      %2093 = vmatpush1.bf16.msra.mxu0 %v2072
      %2094 = vmatprep.subr.bf16.mxu0 0
      %2095 = vmatpush1.bf16.msra.mxu0 %v2073
      %2096 = vmatprep.subr.bf16.mxu0 0
      %2097 = vmatpush1.bf16.msra.mxu0 %v2074
      %2098 = vmatprep.subr.bf16.mxu0 0
      %2099 = vmatpush1.bf16.msra.mxu0 %v2075
      %2100 = vmatprep.subr.bf16.mxu0 0
      %2101 = vmatpush1.bf16.msra.mxu0 0
      %2102 = vmatprep.subr.bf16.mxu0 0
      %2103 = vmatpush1.bf16.msra.mxu0 0
      %2104 = vmatprep.subr.bf16.mxu0 0
      %2105 = vmatpush1.bf16.msra.mxu0 0
      %2106 = vmatprep.subr.bf16.mxu0 0
      %2107 = vmatpush1.bf16.msra.mxu0 0
      %2108 = vmatprep.subr.bf16.mxu0 0
      %2109 = vmatpush1.bf16.msra.mxu0 0
      %2110 = vmatprep.subr.bf16.mxu0 0
      %2111 = vmatpush1.bf16.msra.mxu0 0
      %2112 = vmatprep.subr.bf16.mxu0 0
      %2113 = vmatpush1.bf16.msra.mxu0 0
      %2114 = vmatprep.subr.bf16.mxu0 0
      %2115 = vmatpush1.bf16.msra.mxu0 0
      %2116 = vmatprep.mubr.bf16.mxu0 0
      %2117 = vmatmul.mubr.bf16.gmra.mrb[0].mxu0 %v2018
      %v2118 = vpop.f32.mrb[0].mxu0
      %v2119 = vadd.f32 0.0, %v2118
      %v2120 = vpop.f32.mrb[0].mxu0
      %v2121 = vpop.f32.mrb[0].mxu0
      %v2122 = vadd.f32 0.0, %v2121
      %v2123 = vpop.f32.mrb[0].mxu0
      %2124 = vdwg.mxu0
      %v2125 = vadd.f32 %v2014, %v2119
      %v2126 = vadd.f32 %v2015, %v2122
      %v2127 = vld [vmem:[#allocation3 + $0x9] sm:$0xff]
      %v2128 = vld [vmem:[#allocation3 + $0x11] sm:$0xff]
      %v2129 = vpack.c.bf16 %v2128, %v2127
      %s2130 = scalar_lea.vmem %s2, 320
      %v2131 = vld [vmem:[%s2130] sm:$0xf]
      %v2132 = vld [vmem:[%s2130 + $0x4] sm:$0xf]
      %v2133 = vld [vmem:[%s2130 + $0x8] sm:$0xf]
      %v2134 = vld [vmem:[%s2130 + $0xc] sm:$0xf]
      %v2135 = vld [vmem:[%s2130 + $0x10] sm:$0xf]
      %v2136 = vld [vmem:[%s2130 + $0x14] sm:$0xf]
      %v2137 = vld [vmem:[%s2130 + $0x18] sm:$0xf]
      %v2138 = vld [vmem:[%s2130 + $0x1c] sm:$0xf]
      %v2139 = vld [vmem:[%s2130 + $0x20] sm:$0xf]
      %v2140 = vld [vmem:[%s2130 + $0x24] sm:$0xf]
      %v2141 = vld [vmem:[%s2130 + $0x28] sm:$0xf]
      %v2142 = vld [vmem:[%s2130 + $0x2c] sm:$0xf]
      %v2143 = vld [vmem:[%s2130 + $0x30] sm:$0xf]
      %v2144 = vld [vmem:[%s2130 + $0x34] sm:$0xf]
      %v2145 = vld [vmem:[%s2130 + $0x38] sm:$0xf]
      %v2146 = vld [vmem:[%s2130 + $0x3c] sm:$0xf]
      %v2163 = vunpack.c.l.b16 %v2131
      %v2164 = vunpack.c.l.b16 %v2132
      %v2165 = vunpack.c.l.b16 %v2133
      %v2166 = vunpack.c.l.b16 %v2134
      %v2167 = vunpack.c.l.b16 %v2135
      %v2168 = vunpack.c.l.b16 %v2136
      %v2169 = vunpack.c.l.b16 %v2137
      %v2170 = vunpack.c.l.b16 %v2138
      %v2171 = vunpack.c.l.b16 %v2139
      %v2172 = vunpack.c.l.b16 %v2140
      %v2173 = vunpack.c.l.b16 %v2141
      %v2174 = vunpack.c.l.b16 %v2142
      %v2175 = vunpack.c.l.b16 %v2143
      %v2176 = vunpack.c.l.b16 %v2144
      %v2177 = vunpack.c.l.b16 %v2145
      %v2178 = vunpack.c.l.b16 %v2146
      %v2179 = vpack.c.b16 %v2164, %v2163
      %v2180 = vpack.c.b16 %v2166, %v2165
      %v2181 = vpack.c.b16 %v2168, %v2167
      %v2182 = vpack.c.b16 %v2170, %v2169
      %v2183 = vpack.c.b16 %v2172, %v2171
      %v2184 = vpack.c.b16 %v2174, %v2173
      %v2185 = vpack.c.b16 %v2176, %v2175
      %v2186 = vpack.c.b16 %v2178, %v2177
      %2195 = vmatprep.subr.bf16.mxu0 0
      %2196 = vmatpush1.bf16.msra.mxu0 %v2179
      %2197 = vmatprep.subr.bf16.mxu0 0
      %2198 = vmatpush1.bf16.msra.mxu0 %v2180
      %2199 = vmatprep.subr.bf16.mxu0 0
      %2200 = vmatpush1.bf16.msra.mxu0 %v2181
      %2201 = vmatprep.subr.bf16.mxu0 0
      %2202 = vmatpush1.bf16.msra.mxu0 %v2182
      %2203 = vmatprep.subr.bf16.mxu0 0
      %2204 = vmatpush1.bf16.msra.mxu0 %v2183
      %2205 = vmatprep.subr.bf16.mxu0 0
      %2206 = vmatpush1.bf16.msra.mxu0 %v2184
      %2207 = vmatprep.subr.bf16.mxu0 0
      %2208 = vmatpush1.bf16.msra.mxu0 %v2185
      %2209 = vmatprep.subr.bf16.mxu0 0
      %2210 = vmatpush1.bf16.msra.mxu0 %v2186
      %2211 = vmatprep.subr.bf16.mxu0 0
      %2212 = vmatpush1.bf16.msra.mxu0 0
      %2213 = vmatprep.subr.bf16.mxu0 0
      %2214 = vmatpush1.bf16.msra.mxu0 0
      %2215 = vmatprep.subr.bf16.mxu0 0
      %2216 = vmatpush1.bf16.msra.mxu0 0
      %2217 = vmatprep.subr.bf16.mxu0 0
      %2218 = vmatpush1.bf16.msra.mxu0 0
      %2219 = vmatprep.subr.bf16.mxu0 0
      %2220 = vmatpush1.bf16.msra.mxu0 0
      %2221 = vmatprep.subr.bf16.mxu0 0
      %2222 = vmatpush1.bf16.msra.mxu0 0
      %2223 = vmatprep.subr.bf16.mxu0 0
      %2224 = vmatpush1.bf16.msra.mxu0 0
      %2225 = vmatprep.subr.bf16.mxu0 0
      %2226 = vmatpush1.bf16.msra.mxu0 0
      %2227 = vmatprep.mubr.bf16.mxu0 0
      %2228 = vmatmul.mubr.bf16.gmra.mrb[0].mxu0 %v2129
      %v2229 = vpop.f32.mrb[0].mxu0
      %v2230 = vadd.f32 0.0, %v2229
      %v2231 = vpop.f32.mrb[0].mxu0
      %v2232 = vpop.f32.mrb[0].mxu0
      %v2233 = vadd.f32 0.0, %v2232
      %v2234 = vpop.f32.mrb[0].mxu0
      %2235 = vdwg.mxu0
      %v2236 = vadd.f32 %v2125, %v2230
      %v2237 = vadd.f32 %v2126, %v2233
      %s2238 = scalar_lea.vmem %s3, 4
      %v2239 = vld [vmem:[%s2238] sm:$0x1]
      %v2241 = vlaneseq
      %v2242 = vshrl.u32 %v2241, 7
      %v2243 = vsub.s32 0, %v2242
      %v2244 = vrot.slane %v2239, %v2243
      %v2246 = vadd.f32 %v2236, %v2244
      %v2247 = vadd.f32 %v2237, %v2244
      %v2248 = vmax.f32 %v2246, 0.0
      %v2249 = vmax.f32 %v2247, 0.0
      %v2250 = vadd.f32 %v2248, %v203
      %v2251 = vadd.f32 %v2249, %v204
      %2252 = vst [vmem:[%s197] sm:$0xff] %v2250
      %2253 = vst [vmem:[%s197 + $0x8] sm:$0xff] %v2251
      %p2254 = scmp.lt.s32.totalorder %s15, 1
      %s2255 = scalar_select %p2254, %s15, 1
      %s2256 = smul.addr %s2255, 2
      %s2257 = smul.addr %s2256, 8
      %s2258 = scalar_lea.vmem %s4, %s2257
      // Predicated region
      $region37: #{sf_block.1} parent=35 // pred_check
        %p2259 = pneg %p122
      $region38: #{sf_block.1} parent=35 // pred_check_branch
        %2261 = sbr.rel (%p2259) target = $region40
      $region39: #{sf_block.1} parent=35 // pred_region
        _
      $region40: #{sf_block.1} parent=35 // pred_fallthru
        _
    $region36: #{sf_block.1} parent=5 // pred_fallthru
      _
    %p2262 = scmp.le.s32.totalorder 2, %s10
    // Predicated region
    $region41: #{sf_block.1} parent=5 // pred_check
      %p2263 = pneg %p2262
    $region42: #{sf_block.1} parent=5 // pred_check_branch
      %2265 = sbr.rel (%p2263) target = $region44
    $region43: #{sf_block.1} parent=5 // pred_region
      %s2266 = ssub.s32 %s10, 2
      // Predicated region
      $region45: #{sf_block.1} parent=43 // pred_check
        %p2267 = pneg %p128
      $region46: #{sf_block.1} parent=43 // pred_check_branch
        %2269 = sbr.rel (%p2267) target = $region48
      $region47: #{sf_block.1} parent=43 // pred_region
        %p2270 = scmp.lt.s32.totalorder %s16, 1
        %s2271 = scalar_select %p2270, %s16, 1
        %s2272 = smul.addr %s2271, 2
        %s2273 = smul.addr %s2272, 8
        %s2274 = scalar_lea.vmem %s4, %s2273
      $region48: #{sf_block.1} parent=43 // pred_fallthru
        _
    $region44: #{sf_block.1} parent=5 // pred_fallthru
      _
  $region6: #{sf_block.1} parent=0 // loop_footer
    %s14 = sadd.s32 1, %s10
  $region7: #{sf_block.1} parent=0 // loop_footer_branch
    %9 = sbr.rel target = $region3
  $region8: #{sf_block.1} parent=0 // loop_exit
    _

</llo_original>
